<compile_context>
chip_gen: v7x
topology: tpu7x:2x2x1
jax: 0.10.0
libtpu: 0.0.40
codegen_flags: <defaults>
</compile_context>

<pallas_src>
import functools

import jax
import jax.numpy as jnp
from jax import lax
from jax.experimental import pallas as pl
from jax.experimental.pallas import tpu as pltpu

_LANE = 128


# ----------------------------------------------------------------------------- weight prep

def _prep_wv(w):  # torch conv3x1 weight (C, C, 3, 1) -> (3*C, C), tap-major [i-d, i, i+d]
    C = w.shape[0]
    return jnp.transpose(w, (2, 3, 1, 0)).reshape(3 * C, C).astype(jnp.float32)


def _prep_wh(w):  # torch conv1x3 weight (C, C, 1, 3) -> (3*C, C), tap-major [j-d, j, j+d]
    C = w.shape[0]
    return jnp.transpose(w, (3, 2, 1, 0)).reshape(3 * C, C).astype(jnp.float32)


# ----------------------------------------------------------------------------- tiling helpers

def _choose_row_tile(H, W, C, d, target_bytes):
    """Rows per conv tile: multiple of d, divides H, halo block sublane-aligned, <= byte budget."""
    if H % d != 0 or (d * W) % 8 != 0:
        return H                                   # whole-plane fallback (halos become zeros)
    cands = [r for r in range(d, H + 1, d) if H % r == 0]
    fit = [r for r in cands if r * W * C * 4 <= target_bytes]
    return max(fit) if fit else min(cands)


def _pick_rows(total, row_bytes, target_bytes):
    """Largest multiple-of-8 divisor of `total` whose block stays under target_bytes."""
    cands = [r for r in range(8, total + 1, 8) if total % r == 0]
    if not cands:
        return total
    fit = [r for r in cands if r * row_bytes <= target_bytes]
    return max(fit) if fit else min(cands)


# ----------------------------------------------------------------------------- kernel helpers

def _tap_matmul(taps, w3, fuse):
    """3-tap contraction: fused K=3C matmul (small C) or three accumulated K=C dots (large C)."""
    C = w3.shape[-1]
    if fuse:
        return jnp.dot(jnp.concatenate(taps, axis=-1), w3,
                       preferred_element_type=jnp.float32)
    acc = jnp.dot(taps[0], w3[0:C, :], preferred_element_type=jnp.float32)
    acc = acc + jnp.dot(taps[1], w3[C:2 * C, :], preferred_element_type=jnp.float32)
    acc = acc + jnp.dot(taps[2], w3[2 * C:3 * C, :], preferred_element_type=jnp.float32)
    return acc


def _sep_conv_tile(x_ext, wv, bv, wh, mlo, mhi, *, d, W, rows, fuse):
    """relu(conv3x1(x; dil d) + bv) -> conv1x3(dil d) on one row tile.

    x_ext: ((rows + 2*d) * W, C) f32 — the tile with d halo rows above and below
           (out-of-image halos already zeroed).  Returns (rows*W, C) f32.
    """
    RW = rows * W
    dW = d * W
    # vertical taps = aligned static slices of the halo-extended tile (no roll, no mask)
    taps_v = [x_ext[0:RW], x_ext[dW:dW + RW], x_ext[2 * dW:2 * dW + RW]]
    t = jnp.maximum(_tap_matmul(taps_v, wv, fuse) + bv, 0.0)
    # horizontal taps: per-tile roll (XLU) + precomputed column-validity mask (single VPU mul)
    t_m = pltpu.roll(t, d % RW, 0) * mlo          # t[.., j - d], zero where col < d
    t_p = pltpu.roll(t, (-d) % RW, 0) * mhi       # t[.., j + d], zero where col >= W - d
    return _tap_matmul([t_m, t, t_p], wh, fuse)


def _bn_partials(stat_ref, y, count):
    """Per-tile BN partials: [sum, M2 around the tile mean] (numerically stable combine later)."""
    s = jnp.sum(y, axis=0, keepdims=True)
    yc = y - s * (1.0 / count)
    q = jnp.sum(yc * yc, axis=0, keepdims=True)
    stat_ref[0, 0] = jnp.concatenate([s, q], axis=0)


# ----------------------------------------------------------------------------- kernels

def _stage1_kernel(xc_ref, xt_ref, xb_ref, wv_ref, bv_ref, wh_ref, mlo_ref, mhi_ref,
                   y_ref, stat_ref, *, d, W, rows, n_tiles, fuse):
    t_idx = pl.program_id(1)
    xt = jnp.where(t_idx == 0, 0.0, xt_ref[0].astype(jnp.float32))            # top image edge
    xb = jnp.where(t_idx == n_tiles - 1, 0.0, xb_ref[0].astype(jnp.float32))  # bottom image edge
    x_ext = jnp.concatenate([xt, xc_ref[0].astype(jnp.float32), xb], axis=0)
    y = _sep_conv_tile(x_ext, wv_ref[...], bv_ref[...], wh_ref[...],
                       mlo_ref[...], mhi_ref[...], d=d, W=W, rows=rows, fuse=fuse)
    y_ref[0] = y.astype(y_ref.dtype)
    _bn_partials(stat_ref, y, rows * W)


def _stage2_kernel(yc_ref, yt_ref, yb_ref, sc_ref, sh_ref, wv_ref, bv_ref, wh_ref,
                   mlo_ref, mhi_ref, y_ref, stat_ref, *, d, W, rows, n_tiles, fuse):
    t_idx = pl.program_id(1)
    sc = sc_ref[...]
    sh = sh_ref[...]

    def bnrelu(v):
        return jnp.maximum(v.astype(jnp.float32) * sc + sh, 0.0)

    # BN1-apply + ReLU on the halo rows first, then zero the halos that fall outside the image
    zt = jnp.where(t_idx == 0, 0.0, bnrelu(yt_ref[0]))
    zb = jnp.where(t_idx == n_tiles - 1, 0.0, bnrelu(yb_ref[0]))
    z_ext = jnp.concatenate([zt, bnrelu(yc_ref[0]), zb], axis=0)
    y = _sep_conv_tile(z_ext, wv_ref[...], bv_ref[...], wh_ref[...],
                       mlo_ref[...], mhi_ref[...], d=d, W=W, rows=rows, fuse=fuse)
    y_ref[0] = y.astype(y_ref.dtype)
    _bn_partials(stat_ref, y, rows * W)


def _stage3_kernel(y2_ref, x_ref, a_ref, b_ref, o_ref):
    y = y2_ref[0].astype(jnp.float32) * a_ref[0] + b_ref[0]       # BN2 + Dropout2d folded in a/b
    o_ref[0] = jnp.maximum(y + x_ref[0].astype(jnp.float32), 0.0).astype(o_ref.dtype)


# ----------------------------------------------------------------------------- BN combine

def _bn_scale_shift(stats, tile_count, gamma, beta, eps):
    """Chan-style stable combine of per-tile [sum, M2] partials -> BN scale/shift."""
    N, nT, _, C = stats.shape
    m = jnp.float32(tile_count)
    total = m * (N * nT)
    s = stats[:, :, 0, :].reshape(N * nT, C)
    q = stats[:, :, 1, :].reshape(N * nT, C)
    mean = jnp.sum(s, axis=0) / total
    M2 = jnp.sum(q, axis=0) + m * jnp.sum((s / m - mean) ** 2, axis=0)
    var = M2 / total
    scale = gamma.astype(jnp.float32) * lax.rsqrt(var + eps)
    shift = beta.astype(jnp.float32) - mean * scale
    return scale.reshape(1, C), shift.reshape(1, C)


# ----------------------------------------------------------------------------- wrapper

def non_bottleneck_1d(x_nchw,
                      w31_1, b31_1, w13_1, b13_1, gamma1, beta1,
                      w31_2, b31_2, w13_2, b13_2, gamma2, beta2,
                      dilated=1, dropprob=0.0, eps=1e-3, drop_key=None,
                      interstage_dtype=jnp.float32,
                      row_tile_bytes=1 << 20, stage3_tile_bytes=2 << 20):
    N, C, H, W = x_nchw.shape
    HW = H * W
    d2 = max(int(dilated), 1)

    # TODO(synk): a channels-last caller could skip these two full-tensor transposes
    # (kept for NCHW interface fidelity with the PyTorch module).
    x = jnp.transpose(x_nchw, (0, 2, 3, 1)).reshape(N, HW, C).astype(jnp.float32)

    wv1, wh1 = _prep_wv(w31_1), _prep_wh(w13_1)
    wv2, wh2 = _prep_wv(w31_2), _prep_wh(w13_2)
    bv1 = b31_1.reshape(1, C).astype(jnp.float32)
    bv2 = b31_2.reshape(1, C).astype(jnp.float32)
    # b13_1 / b13_2 are per-channel constants added right before a batch-statistics BatchNorm
    # -> they cancel exactly (training-mode BN) and are dropped from the kernels.
    # TODO(synk): eval-mode BN (running stats) would need the biases and stored statistics.

    fuse = (3 * C) <= 256       # fused K=3C matmul for small C, 3 accumulated dots for C >= 128
    cparams = pltpu.CompilerParams(
        dimension_semantics=("parallel", "parallel"),
        vmem_limit_bytes=32 * 1024 * 1024)   # safe on v7x (64 MiB/TC); plenty on v5e/v6e

    def conv_stage(kernel, src, d, wv, bv, wh, extra_ins=(), extra_specs=()):
        TH = _choose_row_tile(H, W, C, d, row_tile_bytes)
        nT = H // TH
        RW, dW = TH * W, d * W
        col = jnp.arange(RW, dtype=jnp.int32) % W
        mlo = (col >= d).astype(jnp.float32).reshape(RW, 1)       # valid: col - d in image
        mhi = (col < W - d).astype(jnp.float32).reshape(RW, 1)    # valid: col + d in image

        if nT > 1:
            hs = TH // d                        # halo blocks (of d rows) per row tile
            top, bot = src, src
            top_spec = pl.BlockSpec((1, dW, C),
                                    lambda n, t: (n, jnp.maximum(t * hs - 1, 0), 0))
            bot_spec = pl.BlockSpec((1, dW, C),
                                    lambda n, t: (n, jnp.minimum((t + 1) * hs, H // d - 1), 0))
        else:
            top = jnp.zeros((1, dW, C), src.dtype)                # single tile: halos are zero pad
            bot = top
            top_spec = pl.BlockSpec((1, dW, C), lambda n, t: (0, 0, 0))
            bot_spec = top_spec

        center = pl.BlockSpec((1, RW, C), lambda n, t: (n, t, 0))
        w_spec = pl.BlockSpec((3 * C, C), lambda n, t: (0, 0))
        v_spec = pl.BlockSpec((1, C), lambda n, t: (0, 0))
        m_spec = pl.BlockSpec((RW, 1), lambda n, t: (0, 0))

        y_out, stats = pl.pallas_call(
            functools.partial(kernel, d=d, W=W, rows=TH, n_tiles=nT, fuse=fuse),
            out_shape=(jax.ShapeDtypeStruct((N, HW, C), interstage_dtype),
                       jax.ShapeDtypeStruct((N, nT, 2, C), jnp.float32)),
            grid_spec=pltpu.PrefetchScalarGridSpec(
                num_scalar_prefetch=0, grid=(N, nT),
                in_specs=[center, top_spec, bot_spec, *extra_specs,
                          w_spec, v_spec, w_spec, m_spec, m_spec],
                out_specs=[pl.BlockSpec((1, RW, C), lambda n, t: (n, t, 0)),
                           pl.BlockSpec((1, 1, 2, C), lambda n, t: (n, t, 0, 0))]),
            compiler_params=cparams,
        )(src, top, bot, *extra_ins, wv, bv, wh, mlo, mhi)
        return y_out, stats, TH * W

    # ---- stage 1: conv3x1_1 -> ReLU -> conv1x3_1 (+ BN1 partials)
    y1, stats1, m1 = conv_stage(_stage1_kernel, x, 1, wv1, bv1, wh1)
    scale1, shift1 = _bn_scale_shift(stats1, m1, gamma1, beta1, eps)

    # ---- stage 2: BN1 -> ReLU -> conv3x1_2 -> ReLU -> conv1x3_2 (+ BN2 partials)
    v_spec = pl.BlockSpec((1, C), lambda n, t: (0, 0))
    y2, stats2, m2 = conv_stage(_stage2_kernel, y1, d2, wv2, bv2, wh2,
                                extra_ins=(scale1, shift1), extra_specs=(v_spec, v_spec))
    scale2, shift2 = _bn_scale_shift(stats2, m2, gamma2, beta2, eps)

    # ---- stage 3: BN2 -> Dropout2d -> residual add -> ReLU
    if dropprob > 0.0:
        if drop_key is None:
            drop_key = jax.random.PRNGKey(0)   # TODO(synk): fixed default key -> same mask each call
        keep = jax.random.bernoulli(drop_key, 1.0 - dropprob, (N, C))
        drop = keep.astype(jnp.float32) / jnp.float32(1.0 - dropprob)
    else:
        drop = jnp.ones((N, C), jnp.float32)
    a = scale2 * drop                          # (N, C): BN2 scale folded with Dropout2d mask
    b = shift2 * drop

    if C < _LANE and _LANE % C == 0 and (HW * C) % _LANE == 0:
        # Lane-dense epilogue: flatten to 128-wide rows (unmasked vst); per-batch constants
        # tiled across the 128 lanes (channel pattern repeats every C lanes).
        rep = _LANE // C
        rows3 = (HW * C) // _LANE
        a3 = jnp.tile(a, (1, rep)).reshape(N, 1, _LANE)
        b3 = jnp.tile(b, (1, rep)).reshape(N, 1, _LANE)
        y2v = y2.reshape(N, rows3, _LANE)
        xv = x.reshape(N, rows3, _LANE)
        ld = _LANE
    else:
        # C % 128 == 0 is already lane-dense; other channel counts fall back to masked stores.
        rows3 = HW
        a3, b3 = a.reshape(N, 1, C), b.reshape(N, 1, C)
        y2v, xv, ld = y2, x, C

    TM3 = _pick_rows(rows3, ld * 4, stage3_tile_bytes)
    out_flat = pl.pallas_call(
        _stage3_kernel,
        out_shape=jax.ShapeDtypeStruct((N, rows3, ld), jnp.float32),
        grid_spec=pltpu.PrefetchScalarGridSpec(
            num_scalar_prefetch=0, grid=(N, rows3 // TM3),
            in_specs=[pl.BlockSpec((1, TM3, ld), lambda n, m: (n, m, 0)),
                      pl.BlockSpec((1, TM3, ld), lambda n, m: (n, m, 0)),
                      pl.BlockSpec((1, 1, ld), lambda n, m: (n, 0, 0)),
                      pl.BlockSpec((1, 1, ld), lambda n, m: (n, 0, 0))],
            out_specs=pl.BlockSpec((1, TM3, ld), lambda n, m: (n, m, 0))),
        compiler_params=cparams,
    )(y2v, xv, a3, b3)

    out = out_flat.reshape(N, H, W, C)
    return jnp.transpose(out, (0, 3, 1, 2)).astype(x_nchw.dtype)


# ----------------------------------------------------------------------------- pure-JAX reference

def reference(x, w31_1, b31_1, w13_1, b13_1, gamma1, beta1,
              w31_2, b31_2, w13_2, b13_2, gamma2, beta2, dilated=1, eps=1e-3):
    def conv(z, w, b, dil, pad):
        y = lax.conv_general_dilated(
            z, w, window_strides=(1, 1),
            padding=((pad[0], pad[0]), (pad[1], pad[1])),
            rhs_dilation=dil, dimension_numbers=("NCHW", "OIHW", "NCHW"))
        return y + b[None, :, None, None]

    def bn(y, g, be):
        mean = jnp.mean(y, axis=(0, 2, 3), keepdims=True)
        var = jnp.mean((y - mean) ** 2, axis=(0, 2, 3), keepdims=True)
        return (y - mean) * lax.rsqrt(var + eps) * g[None, :, None, None] + be[None, :, None, None]

    d = int(dilated)
    o = jax.nn.relu(conv(x, w31_1, b31_1, (1, 1), (1, 0)))
    o = jax.nn.relu(bn(conv(o, w13_1, b13_1, (1, 1), (0, 1)), gamma1, beta1))
    o = jax.nn.relu(conv(o, w31_2, b31_2, (d, 1), (d, 0)))
    o = bn(conv(o, w13_2, b13_2, (1, d), (0, d)), gamma2, beta2)
    return jax.nn.relu(o + x)


def _make_params(key, N, C, H, W):
    ks = jax.random.split(key, 13)
    nrm = jax.random.normal
    x = nrm(ks[0], (N, C, H, W), jnp.float32)
    p = dict(
        w31_1=0.15 * nrm(ks[1], (C, C, 3, 1), jnp.float32),
        b31_1=0.1 * nrm(ks[2], (C,), jnp.float32),
        w13_1=0.15 * nrm(ks[3], (C, C, 1, 3), jnp.float32),
        b13_1=0.1 * nrm(ks[4], (C,), jnp.float32),
        gamma1=1.0 + 0.1 * nrm(ks[5], (C,), jnp.float32),
        beta1=0.1 * nrm(ks[6], (C,), jnp.float32),
        w31_2=0.15 * nrm(ks[7], (C, C, 3, 1), jnp.float32),
        b31_2=0.1 * nrm(ks[8], (C,), jnp.float32),
        w13_2=0.15 * nrm(ks[9], (C, C, 1, 3), jnp.float32),
        b13_2=0.1 * nrm(ks[10], (C,), jnp.float32),
        gamma2=1.0 + 0.1 * nrm(ks[11], (C,), jnp.float32),
        beta2=0.1 * nrm(ks[12], (C,), jnp.float32),
    )
    args = (x, p["w31_1"], p["b31_1"], p["w13_1"], p["b13_1"], p["gamma1"], p["beta1"],
            p["w31_2"], p["b31_2"], p["w13_2"], p["b13_2"], p["gamma2"], p["beta2"])
    return args


if __name__ == "__main__":
    # ---- primary config: small C, fused-tap path, lane-dense stage 3
    N, C, H, W = 2, 8, 16, 16
    dilated = 2
    args = _make_params(jax.random.PRNGKey(0), N, C, H, W)
    ref = jax.block_until_ready(reference(*args, dilated=dilated))

    # 1) f32 inter-stage, default tiling (single row tile per batch)
    out = jax.block_until_ready(non_bottleneck_1d(*args, dilated=dilated, dropprob=0.0))
    assert out.shape == (N, C, H, W), out.shape
    err = float(jnp.max(jnp.abs(out - ref)))
    assert jnp.allclose(out, ref, rtol=2e-3, atol=2e-3), f"default path max abs err {err}"

    # 2) f32 inter-stage, forced small row tiles (exercises the halo-block path + tiled stage 3)
    out_t = jax.block_until_ready(non_bottleneck_1d(
        *args, dilated=dilated, dropprob=0.0, row_tile_bytes=2048, stage3_tile_bytes=4096))
    err = float(jnp.max(jnp.abs(out_t - ref)))
    assert jnp.allclose(out_t, ref, rtol=2e-3, atol=2e-3), f"tiled path max abs err {err}"

    # 3) bf16 inter-stage activations (halves inter-stage HBM traffic); looser tolerance
    out_b = jax.block_until_ready(non_bottleneck_1d(
        *args, dilated=dilated, dropprob=0.0, interstage_dtype=jnp.bfloat16, row_tile_bytes=2048))
    err = float(jnp.max(jnp.abs(out_b - ref)))
    assert jnp.allclose(out_b, ref, rtol=2e-2, atol=2e-2), f"bf16 path max abs err {err}"

    # 4) larger-C config: accumulated-dot tap path + channel-layout stage 3
    N2, C2, H2, W2 = 1, 96, 8, 8
    args2 = _make_params(jax.random.PRNGKey(1), N2, C2, H2, W2)
    ref2 = jax.block_until_ready(reference(*args2, dilated=dilated))
    out2 = jax.block_until_ready(non_bottleneck_1d(*args2, dilated=dilated, dropprob=0.0))
    err = float(jnp.max(jnp.abs(out2 - ref2)))
    assert jnp.allclose(out2, ref2, rtol=2e-3, atol=2e-3), f"large-C path max abs err {err}"

    # 5) dropout smoke test (stochastic channel mask; shape/finiteness only)
    out_d = jax.block_until_ready(non_bottleneck_1d(
        *args, dilated=dilated, dropprob=0.3, drop_key=jax.random.PRNGKey(7)))
    assert out_d.shape == (N, C, H, W) and bool(jnp.all(jnp.isfinite(out_d)))

    print("KERNEL_OK")
</pallas_src>

<mosaic_0001>
module attributes {stable_mosaic.version = 11 : i64} {
  func.func @_stage1_kernel(%arg0: i32, %arg1: i32, %arg2: memref<1x256x8xf32, #tpu.memory_space<vmem>>, %arg3: memref<1x16x8xf32, #tpu.memory_space<vmem>>, %arg4: memref<1x16x8xf32, #tpu.memory_space<vmem>>, %arg5: memref<24x8xf32, #tpu.memory_space<vmem>>, %arg6: memref<1x8xf32, #tpu.memory_space<vmem>>, %arg7: memref<24x8xf32, #tpu.memory_space<vmem>>, %arg8: memref<256x1xf32, #tpu.memory_space<vmem>>, %arg9: memref<256x1xf32, #tpu.memory_space<vmem>>, %arg10: memref<1x256x8xf32, #tpu.memory_space<vmem>>, %arg11: memref<1x1x2x8xf32, #tpu.memory_space<vmem>>) attributes {dimension_semantics = [#tpu.dimension_semantics<parallel>, #tpu.dimension_semantics<parallel>], iteration_bounds = array<i64: 2, 1>, scalar_prefetch = 0 : i64, scratch_operands = 0 : i64, tpu.core_type = #tpu.core_type<tc>, window_params = [{transform_indices = @transform_0, window_bounds = array<i64: 1, 256, 8>}, {pipeline_mode = #tpu.pipeline_mode<synchronous>, transform_indices = @transform_1, window_bounds = array<i64: 1, 16, 8>}, {pipeline_mode = #tpu.pipeline_mode<synchronous>, transform_indices = @transform_2, window_bounds = array<i64: 1, 16, 8>}, {pipeline_mode = #tpu.pipeline_mode<synchronous>, transform_indices = @transform_3, window_bounds = array<i64: 24, 8>}, {pipeline_mode = #tpu.pipeline_mode<synchronous>, transform_indices = @transform_4, window_bounds = array<i64: 1, 8>}, {pipeline_mode = #tpu.pipeline_mode<synchronous>, transform_indices = @transform_5, window_bounds = array<i64: 24, 8>}, {pipeline_mode = #tpu.pipeline_mode<synchronous>, transform_indices = @transform_6, window_bounds = array<i64: 256, 1>}, {pipeline_mode = #tpu.pipeline_mode<synchronous>, transform_indices = @transform_7, window_bounds = array<i64: 256, 1>}, {transform_indices = @transform_8, window_bounds = array<i64: 1, 256, 8>}, {transform_indices = @transform_9, window_bounds = array<i64: 1, 1, 2, 8>}]} {
    %c0_i32 = arith.constant 0 : i32
    %0 = arith.cmpi eq, %arg1, %c0_i32 : i32
    %c0 = arith.constant 0 : index
    %c0_0 = arith.constant 0 : index
    %c0_1 = arith.constant 0 : index
    %1 = vector.load %arg3[%c0, %c0_0, %c0_1] : memref<1x16x8xf32, #tpu.memory_space<vmem>>, vector<1x16x8xf32>
    %2 = vector.shape_cast %1 : vector<1x16x8xf32> to vector<16x8xf32>
    %cst = arith.constant 0.000000e+00 : f32
    %3 = vector.broadcast %cst : f32 to vector<16x8xf32>
    %4 = arith.select %0, %3, %2 : vector<16x8xf32>
    %c0_i32_2 = arith.constant 0 : i32
    %5 = arith.cmpi eq, %arg1, %c0_i32_2 : i32
    %c0_3 = arith.constant 0 : index
    %c0_4 = arith.constant 0 : index
    %c0_5 = arith.constant 0 : index
    %6 = vector.load %arg4[%c0_3, %c0_4, %c0_5] : memref<1x16x8xf32, #tpu.memory_space<vmem>>, vector<1x16x8xf32>
    %7 = vector.shape_cast %6 : vector<1x16x8xf32> to vector<16x8xf32>
    %cst_6 = arith.constant 0.000000e+00 : f32
    %8 = vector.broadcast %cst_6 : f32 to vector<16x8xf32>
    %9 = arith.select %5, %8, %7 : vector<16x8xf32>
    %c0_7 = arith.constant 0 : index
    %c0_8 = arith.constant 0 : index
    %c0_9 = arith.constant 0 : index
    %10 = vector.load %arg2[%c0_7, %c0_8, %c0_9] : memref<1x256x8xf32, #tpu.memory_space<vmem>>, vector<1x256x8xf32>
    %11 = vector.shape_cast %10 : vector<1x256x8xf32> to vector<256x8xf32>
    %12 = tpu.concatenate %4, %11, %9 in 0 : vector<16x8xf32>, vector<256x8xf32>, vector<16x8xf32> -> vector<288x8xf32>
    %c0_10 = arith.constant 0 : index
    %c0_11 = arith.constant 0 : index
    %13 = vector.load %arg5[%c0_10, %c0_11] : memref<24x8xf32, #tpu.memory_space<vmem>>, vector<24x8xf32>
    %c0_12 = arith.constant 0 : index
    %c0_13 = arith.constant 0 : index
    %14 = vector.load %arg6[%c0_12, %c0_13] : memref<1x8xf32, #tpu.memory_space<vmem>>, vector<1x8xf32>
    %c0_14 = arith.constant 0 : index
    %c0_15 = arith.constant 0 : index
    %15 = vector.load %arg7[%c0_14, %c0_15] : memref<24x8xf32, #tpu.memory_space<vmem>>, vector<24x8xf32>
    %c0_16 = arith.constant 0 : index
    %c0_17 = arith.constant 0 : index
    %16 = vector.load %arg8[%c0_16, %c0_17] : memref<256x1xf32, #tpu.memory_space<vmem>>, vector<256x1xf32>
    %c0_18 = arith.constant 0 : index
    %c0_19 = arith.constant 0 : index
    %17 = vector.load %arg9[%c0_18, %c0_19] : memref<256x1xf32, #tpu.memory_space<vmem>>, vector<256x1xf32>
    %18 = vector.extract_strided_slice %12 {offsets = [0, 0], sizes = [256, 8], strides = [1, 1]} : vector<288x8xf32> to vector<256x8xf32>
    %19 = vector.extract_strided_slice %12 {offsets = [16, 0], sizes = [256, 8], strides = [1, 1]} : vector<288x8xf32> to vector<256x8xf32>
    %20 = vector.extract_strided_slice %12 {offsets = [32, 0], sizes = [256, 8], strides = [1, 1]} : vector<288x8xf32> to vector<256x8xf32>
    %21 = tpu.concatenate %18, %19, %20 in 1 : vector<256x8xf32>, vector<256x8xf32>, vector<256x8xf32> -> vector<256x24xf32>
    %cst_20 = arith.constant dense<0.000000e+00> : vector<256x8xf32>
    %22 = tpu.matmul %21, %13, %cst_20 {dimension_numbers = #tpu.dot_dimension_numbers<[1], [0], [0], [1], [0, 0, 1, 1], [], []>} : vector<256x24xf32>, vector<24x8xf32>, vector<256x8xf32> -> vector<256x8xf32>
    %23 = vector.broadcast %14 : vector<1x8xf32> to vector<256x8xf32>
    %24 = arith.addf %22, %23 : vector<256x8xf32>
    %cst_21 = arith.constant 0.000000e+00 : f32
    %25 = vector.broadcast %cst_21 : f32 to vector<256x8xf32>
    %26 = arith.maximumf %24, %25 : vector<256x8xf32>
    %c1_i32 = arith.constant 1 : i32
    %27 = tpu.dynamic_rotate %26 by %c1_i32 dim 0 : vector<256x8xf32>, i32 -> vector<256x8xf32>
    %28 = vector.broadcast %16 : vector<256x1xf32> to vector<256x8xf32>
    %29 = arith.mulf %27, %28 : vector<256x8xf32>
    %c255_i32 = arith.constant 255 : i32
    %30 = tpu.dynamic_rotate %26 by %c255_i32 dim 0 : vector<256x8xf32>, i32 -> vector<256x8xf32>
    %31 = vector.broadcast %17 : vector<256x1xf32> to vector<256x8xf32>
    %32 = arith.mulf %30, %31 : vector<256x8xf32>
    %33 = tpu.concatenate %29, %26, %32 in 1 : vector<256x8xf32>, vector<256x8xf32>, vector<256x8xf32> -> vector<256x24xf32>
    %cst_22 = arith.constant dense<0.000000e+00> : vector<256x8xf32>
    %34 = tpu.matmul %33, %15, %cst_22 {dimension_numbers = #tpu.dot_dimension_numbers<[1], [0], [0], [1], [0, 0, 1, 1], [], []>} : vector<256x24xf32>, vector<24x8xf32>, vector<256x8xf32> -> vector<256x8xf32>
    %c0_23 = arith.constant 0 : index
    %c0_24 = arith.constant 0 : index
    %c0_25 = arith.constant 0 : index
    %35 = vector.load %arg10[%c0_23, %c0_24, %c0_25] : memref<1x256x8xf32, #tpu.memory_space<vmem>>, vector<1x256x8xf32>
    %36 = vector.shape_cast %35 : vector<1x256x8xf32> to vector<256x8xf32>
    %37 = vector.shape_cast %34 : vector<256x8xf32> to vector<1x256x8xf32>
    tpu.vector_store %arg10[%c0_23, %c0_24, %c0_25], %37 {strides = array<i32>} : memref<1x256x8xf32, #tpu.memory_space<vmem>>, vector<1x256x8xf32>,
    %cst_26 = arith.constant dense<0.000000e+00> : vector<8xf32>
    %38 = vector.multi_reduction <add>, %34, %cst_26 [0] : vector<256x8xf32> to vector<8xf32>
    %39 = vector.shape_cast %38 : vector<8xf32> to vector<1x8xf32>
    %cst_27 = arith.constant 3.906250e-03 : f32
    %40 = vector.broadcast %cst_27 : f32 to vector<1x8xf32>
    %41 = arith.mulf %39, %40 : vector<1x8xf32>
    %42 = vector.broadcast %41 : vector<1x8xf32> to vector<256x8xf32>
    %43 = arith.subf %34, %42 : vector<256x8xf32>
    %44 = arith.mulf %43, %43 : vector<256x8xf32>
    %cst_28 = arith.constant dense<0.000000e+00> : vector<8xf32>
    %45 = vector.multi_reduction <add>, %44, %cst_28 [0] : vector<256x8xf32> to vector<8xf32>
    %46 = vector.shape_cast %45 : vector<8xf32> to vector<1x8xf32>
    %47 = tpu.concatenate %39, %46 in 0 : vector<1x8xf32>, vector<1x8xf32> -> vector<2x8xf32>
    %c0_29 = arith.constant 0 : index
    %c0_30 = arith.constant 0 : index
    %c0_31 = arith.constant 0 : index
    %c0_32 = arith.constant 0 : index
    %48 = vector.load %arg11[%c0_29, %c0_30, %c0_31, %c0_32] : memref<1x1x2x8xf32, #tpu.memory_space<vmem>>, vector<1x1x2x8xf32>
    %49 = vector.shape_cast %48 : vector<1x1x2x8xf32> to vector<2x8xf32>
    %50 = vector.shape_cast %47 : vector<2x8xf32> to vector<1x1x2x8xf32>
    tpu.vector_store %arg11[%c0_29, %c0_30, %c0_31, %c0_32], %50 {strides = array<i32>} : memref<1x1x2x8xf32, #tpu.memory_space<vmem>>, vector<1x1x2x8xf32>,
    return
  }
  func.func @transform_0(%arg0: i32, %arg1: i32) -> (i32, i32, i32) {
    %c0_i32 = arith.constant 0 : i32
    %c0_i32_0 = arith.constant 0 : i32
    return %arg0, %arg1, %c0_i32 : i32, i32, i32
  }
  func.func @transform_1(%arg0: i32, %arg1: i32) -> (i32, i32, i32) {
    %c0_i32 = arith.constant 0 : i32
    %c0_i32_0 = arith.constant 0 : i32
    %c0_i32_1 = arith.constant 0 : i32
    %c0_i32_2 = arith.constant 0 : i32
    return %c0_i32, %c0_i32_0, %c0_i32_1 : i32, i32, i32
  }
  func.func @transform_2(%arg0: i32, %arg1: i32) -> (i32, i32, i32) {
    %c0_i32 = arith.constant 0 : i32
    %c0_i32_0 = arith.constant 0 : i32
    %c0_i32_1 = arith.constant 0 : i32
    %c0_i32_2 = arith.constant 0 : i32
    return %c0_i32, %c0_i32_0, %c0_i32_1 : i32, i32, i32
  }
  func.func @transform_3(%arg0: i32, %arg1: i32) -> (i32, i32) {
    %c0_i32 = arith.constant 0 : i32
    %c0_i32_0 = arith.constant 0 : i32
    %c0_i32_1 = arith.constant 0 : i32
    return %c0_i32, %c0_i32_0 : i32, i32
  }
  func.func @transform_4(%arg0: i32, %arg1: i32) -> (i32, i32) {
    %c0_i32 = arith.constant 0 : i32
    %c0_i32_0 = arith.constant 0 : i32
    %c0_i32_1 = arith.constant 0 : i32
    return %c0_i32, %c0_i32_0 : i32, i32
  }
  func.func @transform_5(%arg0: i32, %arg1: i32) -> (i32, i32) {
    %c0_i32 = arith.constant 0 : i32
    %c0_i32_0 = arith.constant 0 : i32
    %c0_i32_1 = arith.constant 0 : i32
    return %c0_i32, %c0_i32_0 : i32, i32
  }
  func.func @transform_6(%arg0: i32, %arg1: i32) -> (i32, i32) {
    %c0_i32 = arith.constant 0 : i32
    %c0_i32_0 = arith.constant 0 : i32
    %c0_i32_1 = arith.constant 0 : i32
    return %c0_i32, %c0_i32_0 : i32, i32
  }
  func.func @transform_7(%arg0: i32, %arg1: i32) -> (i32, i32) {
    %c0_i32 = arith.constant 0 : i32
    %c0_i32_0 = arith.constant 0 : i32
    %c0_i32_1 = arith.constant 0 : i32
    return %c0_i32, %c0_i32_0 : i32, i32
  }
  func.func @transform_8(%arg0: i32, %arg1: i32) -> (i32, i32, i32) {
    %c0_i32 = arith.constant 0 : i32
    %c0_i32_0 = arith.constant 0 : i32
    return %arg0, %arg1, %c0_i32 : i32, i32, i32
  }
  func.func @transform_9(%arg0: i32, %arg1: i32) -> (i32, i32, i32, i32) {
    %c0_i32 = arith.constant 0 : i32
    %c0_i32_0 = arith.constant 0 : i32
    %c0_i32_1 = arith.constant 0 : i32
    return %arg0, %arg1, %c0_i32, %c0_i32_0 : i32, i32, i32, i32
  }
}

</mosaic_0001>

<llo_original>
// kernel: tpu_custom_call.1
$region0: #{tpu_custom_call.1}
  #allocation0 [shape = 'u32[]', space=smem, size = 0x4, offset = 0x4, fixed_abs, tag = 'smem constant byte address 0x4 - core index']
  #allocation1 [shape = 'u32[144,128]{1,0:T(1,128)}', space=vmem, size = 0x12000, scoped, tag = 'internal scratch']
  %s0 = inlined_call_operand.vmem [shape: f32[2,256,8], index: 0, kind: input, shape index: {}]
  %s1 = inlined_call_operand.vmem [shape: f32[1,16,8], index: 1, kind: input, shape index: {}]
  %s2 = inlined_call_operand.vmem [shape: f32[1,16,8], index: 2, kind: input, shape index: {}]
  %s3 = inlined_call_operand.vmem [shape: f32[24,8], index: 3, kind: input, shape index: {}]
  %s4 = inlined_call_operand.vmem [shape: f32[1,8], index: 4, kind: input, shape index: {}]
  %s5 = inlined_call_operand.vmem [shape: f32[24,8], index: 5, kind: input, shape index: {}]
  %s6 = inlined_call_operand.vmem [shape: f32[256,1], index: 6, kind: input, shape index: {}]
  %s7 = inlined_call_operand.vmem [shape: f32[256,1], index: 7, kind: input, shape index: {}]
  %s8 = inlined_call_operand.vmem [shape: f32[2,256,8], index: 8, kind: output, shape index: {0}]
  %s9 = inlined_call_operand.hbm [shape: f32[2,1,2,8], index: 9, kind: output, shape index: {1}]
  %10 = xla_tuple %s8, %s9
  %s11 = sld [smem:[#allocation0]]
  $region73: #{tpu_custom_call.1} parent=0
    _
  %s13 = ssub.s32 1, %s11
  %s14 = scalar_select 0, %s13, %s11
  $region1: #{tpu_custom_call.1} parent=0
    #allocation2 [shape = 'u8[2048]{0}', space=vmem, size = 0x800, scoped, tag = 'output window, operand 1']
    #allocation3 [shape = 's32[2]{0}', space=sflag, size = 0x8, scoped, tag = 'scoped memory for tpu_custom_call.1']
    %15 = vsyncpa [#allocation3], 0
    %s16 = scalar_lea.sflag [#allocation3], 1
    %17 = vsyncpa %s16, 0
    loop: start=0, step=1, limit=4
    $region2: #{tpu_custom_call.1} parent=1 // loop_pre_header
      _
    $region3: #{tpu_custom_call.1} parent=1 // loop_header
      %s19 = sphi 0, %s23
      %p20 = scmp.ge.s32.totalorder %s19, 4
      %s26 = sphi 0, %s38
      %s27 = sphi 0, %s34
      %s28 = sphi 0, %s26
      %s29 = sphi 0, %s27
      %s30 = sphi 0, %s28
      %s31 = sphi 0, %s29
      %s43 = sphi 0, %s45
      %s46 = sphi 0, %s43
      %s47 = sphi 0, %s46
      %s63 = sphi 0, %s47
      %s67 = sphi 0, %s67
      %s69 = sphi 0, %s67
      %s70 = sphi 0, %s69
      %s84 = sphi 0, %s70
      %s88 = sphi 0, %s88
      %s90 = sphi 0, %s88
      %s91 = sphi 0, %s90
      %s105 = sphi 0, %s91
      %s109 = sphi 0, %s109
      %s111 = sphi 0, %s109
      %s112 = sphi 0, %s111
      %s126 = sphi 0, %s112
      %s130 = sphi 0, %s130
      %s132 = sphi 0, %s130
      %s133 = sphi 0, %s132
      %s147 = sphi 0, %s133
      %s151 = sphi 0, %s151
      %s153 = sphi 0, %s151
      %s154 = sphi 0, %s153
      %s168 = sphi 0, %s154
      %s172 = sphi 0, %s172
      %s174 = sphi 0, %s172
      %s175 = sphi 0, %s174
      %s189 = sphi 0, %s175
      %s193 = sphi 0, %s193
      %s195 = sphi 0, %s193
      %s196 = sphi 0, %s195
      %s210 = sphi 0, %s196
      %s218 = sphi 0, %s220
      %s221 = sphi 0, %s218
      %s222 = sphi 0, %s221
      %s238 = sphi 0, %s222
      %s246 = sphi 0, %s248
      %s249 = sphi 0, %s246
      %s250 = sphi 0, %s249
      %s266 = sphi 0, %s250
    $region4: #{tpu_custom_call.1} parent=1 // loop_header_branch
      %22 = sbr.rel (%p20) target = $region8
    $region5: #{tpu_custom_call.1} parent=1 // loop_body
      %s24 = ssub.s32 %s19, 1
      %s25 = ssub.s32 %s19, 2
      %s32 = sadd.s32 1, %s27
      %p33 = scmp.ge.s32.totalorder %s32, 1
      %s34 = scalar_select %p33, 0, %s32
      %s35 = sadd.s32 1, %s26
      %s36 = scalar_select %p33, %s35, %s26
      %p37 = scmp.ge.s32.totalorder %s36, 2
      %s38 = scalar_select %p37, 0, %s36
      %s39 = ssub.s32 %s26, %s38
      %s40 = ssub.s32 %s27, %s34
      %s41 = sor.u32 %s39, %s40
      %p42 = scmp.eq.s32.totalorder %s41, 0
      %s44 = sadd.s32 %s43, 1
      %s45 = scalar_select %p42, %s43, %s44
      %p48 = pneg %p42
      %p49 = scmp.eq.s32.totalorder %s19, 1
      %p50 = por %p48, %p49
      %p51 = scmp.ne.s32.totalorder %s43, %s46
      %p52 = scmp.eq.s32.totalorder %s19, 0
      %p53 = por %p51, %p52
      %p54 = scmp.ne.s32.totalorder %s43, %s46
      %p55 = scmp.eq.s32.totalorder %s24, 1
      %p56 = por %p54, %p55
      %p57 = scmp.ne.s32.totalorder %s46, %s47
      %p58 = scmp.eq.s32.totalorder %s24, 0
      %p59 = por %p57, %p58
      %p60 = scmp.ne.s32.totalorder %s46, %s47
      %p61 = scmp.eq.s32.totalorder %s25, 1
      %p62 = por %p60, %p61
      %p64 = scmp.ne.s32.totalorder %s47, %s63
      %p65 = scmp.eq.s32.totalorder %s25, 0
      %p66 = por %p64, %p65
      %s68 = sadd.s32 %s67, 1
      %p71 = scmp.eq.s32.totalorder %s19, 1
      %p72 = scmp.ne.s32.totalorder %s67, %s69
      %p73 = scmp.eq.s32.totalorder %s19, 0
      %p74 = por %p72, %p73
      %p75 = scmp.ne.s32.totalorder %s67, %s69
      %p76 = scmp.eq.s32.totalorder %s24, 1
      %p77 = por %p75, %p76
      %p78 = scmp.ne.s32.totalorder %s69, %s70
      %p79 = scmp.eq.s32.totalorder %s24, 0
      %p80 = por %p78, %p79
      %p81 = scmp.ne.s32.totalorder %s69, %s70
      %p82 = scmp.eq.s32.totalorder %s25, 1
      %p83 = por %p81, %p82
      %p85 = scmp.ne.s32.totalorder %s70, %s84
      %p86 = scmp.eq.s32.totalorder %s25, 0
      %p87 = por %p85, %p86
      %s89 = sadd.s32 %s88, 1
      %p92 = scmp.eq.s32.totalorder %s19, 1
      %p93 = scmp.ne.s32.totalorder %s88, %s90
      %p94 = scmp.eq.s32.totalorder %s19, 0
      %p95 = por %p93, %p94
      %p96 = scmp.ne.s32.totalorder %s88, %s90
      %p97 = scmp.eq.s32.totalorder %s24, 1
      %p98 = por %p96, %p97
      %p99 = scmp.ne.s32.totalorder %s90, %s91
      %p100 = scmp.eq.s32.totalorder %s24, 0
      %p101 = por %p99, %p100
      %p102 = scmp.ne.s32.totalorder %s90, %s91
      %p103 = scmp.eq.s32.totalorder %s25, 1
      %p104 = por %p102, %p103
      %p106 = scmp.ne.s32.totalorder %s91, %s105
      %p107 = scmp.eq.s32.totalorder %s25, 0
      %p108 = por %p106, %p107
      %s110 = sadd.s32 %s109, 1
      %p113 = scmp.eq.s32.totalorder %s19, 1
      %p114 = scmp.ne.s32.totalorder %s109, %s111
      %p115 = scmp.eq.s32.totalorder %s19, 0
      %p116 = por %p114, %p115
      %p117 = scmp.ne.s32.totalorder %s109, %s111
      %p118 = scmp.eq.s32.totalorder %s24, 1
      %p119 = por %p117, %p118
      %p120 = scmp.ne.s32.totalorder %s111, %s112
      %p121 = scmp.eq.s32.totalorder %s24, 0
      %p122 = por %p120, %p121
      %p123 = scmp.ne.s32.totalorder %s111, %s112
      %p124 = scmp.eq.s32.totalorder %s25, 1
      %p125 = por %p123, %p124
      %p127 = scmp.ne.s32.totalorder %s112, %s126
      %p128 = scmp.eq.s32.totalorder %s25, 0
      %p129 = por %p127, %p128
      %s131 = sadd.s32 %s130, 1
      %p134 = scmp.eq.s32.totalorder %s19, 1
      %p135 = scmp.ne.s32.totalorder %s130, %s132
      %p136 = scmp.eq.s32.totalorder %s19, 0
      %p137 = por %p135, %p136
      %p138 = scmp.ne.s32.totalorder %s130, %s132
      %p139 = scmp.eq.s32.totalorder %s24, 1
      %p140 = por %p138, %p139
      %p141 = scmp.ne.s32.totalorder %s132, %s133
      %p142 = scmp.eq.s32.totalorder %s24, 0
      %p143 = por %p141, %p142
      %p144 = scmp.ne.s32.totalorder %s132, %s133
      %p145 = scmp.eq.s32.totalorder %s25, 1
      %p146 = por %p144, %p145
      %p148 = scmp.ne.s32.totalorder %s133, %s147
      %p149 = scmp.eq.s32.totalorder %s25, 0
      %p150 = por %p148, %p149
      %s152 = sadd.s32 %s151, 1
      %p155 = scmp.eq.s32.totalorder %s19, 1
      %p156 = scmp.ne.s32.totalorder %s151, %s153
      %p157 = scmp.eq.s32.totalorder %s19, 0
      %p158 = por %p156, %p157
      %p159 = scmp.ne.s32.totalorder %s151, %s153
      %p160 = scmp.eq.s32.totalorder %s24, 1
      %p161 = por %p159, %p160
      %p162 = scmp.ne.s32.totalorder %s153, %s154
      %p163 = scmp.eq.s32.totalorder %s24, 0
      %p164 = por %p162, %p163
      %p165 = scmp.ne.s32.totalorder %s153, %s154
      %p166 = scmp.eq.s32.totalorder %s25, 1
      %p167 = por %p165, %p166
      %p169 = scmp.ne.s32.totalorder %s154, %s168
      %p170 = scmp.eq.s32.totalorder %s25, 0
      %p171 = por %p169, %p170
      %s173 = sadd.s32 %s172, 1
      %p176 = scmp.eq.s32.totalorder %s19, 1
      %p177 = scmp.ne.s32.totalorder %s172, %s174
      %p178 = scmp.eq.s32.totalorder %s19, 0
      %p179 = por %p177, %p178
      %p180 = scmp.ne.s32.totalorder %s172, %s174
      %p181 = scmp.eq.s32.totalorder %s24, 1
      %p182 = por %p180, %p181
      %p183 = scmp.ne.s32.totalorder %s174, %s175
      %p184 = scmp.eq.s32.totalorder %s24, 0
      %p185 = por %p183, %p184
      %p186 = scmp.ne.s32.totalorder %s174, %s175
      %p187 = scmp.eq.s32.totalorder %s25, 1
      %p188 = por %p186, %p187
      %p190 = scmp.ne.s32.totalorder %s175, %s189
      %p191 = scmp.eq.s32.totalorder %s25, 0
      %p192 = por %p190, %p191
      %s194 = sadd.s32 %s193, 1
      %p197 = scmp.eq.s32.totalorder %s19, 1
      %p198 = scmp.ne.s32.totalorder %s193, %s195
      %p199 = scmp.eq.s32.totalorder %s19, 0
      %p200 = por %p198, %p199
      %p201 = scmp.ne.s32.totalorder %s193, %s195
      %p202 = scmp.eq.s32.totalorder %s24, 1
      %p203 = por %p201, %p202
      %p204 = scmp.ne.s32.totalorder %s195, %s196
      %p205 = scmp.eq.s32.totalorder %s24, 0
      %p206 = por %p204, %p205
      %p207 = scmp.ne.s32.totalorder %s195, %s196
      %p208 = scmp.eq.s32.totalorder %s25, 1
      %p209 = por %p207, %p208
      %p211 = scmp.ne.s32.totalorder %s196, %s210
      %p212 = scmp.eq.s32.totalorder %s25, 0
      %p213 = por %p211, %p212
      %s214 = ssub.s32 %s26, %s38
      %s215 = ssub.s32 %s27, %s34
      %s216 = sor.u32 %s214, %s215
      %p217 = scmp.eq.s32.totalorder %s216, 0
      %s219 = sadd.s32 %s218, 1
      %s220 = scalar_select %p217, %s218, %s219
      %p223 = pneg %p217
      %p224 = scmp.eq.s32.totalorder %s19, 1
      %p225 = por %p223, %p224
      %p226 = scmp.ne.s32.totalorder %s218, %s221
      %p227 = scmp.eq.s32.totalorder %s19, 0
      %p228 = por %p226, %p227
      %p229 = scmp.ne.s32.totalorder %s218, %s221
      %p230 = scmp.eq.s32.totalorder %s24, 1
      %p231 = por %p229, %p230
      %p232 = scmp.ne.s32.totalorder %s221, %s222
      %p233 = scmp.eq.s32.totalorder %s24, 0
      %p234 = por %p232, %p233
      %p235 = scmp.ne.s32.totalorder %s221, %s222
      %p236 = scmp.eq.s32.totalorder %s25, 1
      %p237 = por %p235, %p236
      %p239 = scmp.ne.s32.totalorder %s222, %s238
      %p240 = scmp.eq.s32.totalorder %s25, 0
      %p241 = por %p239, %p240
      %s242 = ssub.s32 %s26, %s38
      %s243 = ssub.s32 %s27, %s34
      %s244 = sor.u32 %s242, %s243
      %p245 = scmp.eq.s32.totalorder %s244, 0
      %s247 = sadd.s32 %s246, 1
      %s248 = scalar_select %p245, %s246, %s247
      %p251 = pneg %p245
      %p252 = scmp.eq.s32.totalorder %s19, 1
      %p253 = por %p251, %p252
      %p254 = scmp.ne.s32.totalorder %s246, %s249
      %p255 = scmp.eq.s32.totalorder %s19, 0
      %p256 = por %p254, %p255
      %p257 = scmp.ne.s32.totalorder %s246, %s249
      %p258 = scmp.eq.s32.totalorder %s24, 1
      %p259 = por %p257, %p258
      %p260 = scmp.ne.s32.totalorder %s249, %s250
      %p261 = scmp.eq.s32.totalorder %s24, 0
      %p262 = por %p260, %p261
      %p263 = scmp.ne.s32.totalorder %s249, %s250
      %p264 = scmp.eq.s32.totalorder %s25, 1
      %p265 = por %p263, %p264
      %p267 = scmp.ne.s32.totalorder %s250, %s266
      %p268 = scmp.eq.s32.totalorder %s25, 0
      %p269 = por %p267, %p268
      %p270 = scmp.le.s32.totalorder 1, %s19
      %p271 = scmp.lt.s32.totalorder %s19, 3
      %p272 = pnand %p270, %p271
      %p273 = pneg %p272
      // Predicated region
      $region9: #{tpu_custom_call.1} parent=5 // pred_check
        _
      $region10: #{tpu_custom_call.1} parent=5 // pred_check_branch
        %275 = sbr.rel (%p272) target = $region12
      $region11: #{tpu_custom_call.1} parent=5 // pred_region
        %s276 = ssub.s32 %s19, 1
        // Predicated region
        $region13: #{tpu_custom_call.1} parent=11 // pred_check
          %p277 = pneg %p80
        $region14: #{tpu_custom_call.1} parent=11 // pred_check_branch
          %279 = sbr.rel (%p277) target = $region16
        $region15: #{tpu_custom_call.1} parent=11 // pred_region
          _
        $region16: #{tpu_custom_call.1} parent=11 // pred_fallthru
          _
        // Predicated region
        $region17: #{tpu_custom_call.1} parent=11 // pred_check
          %p280 = pneg %p101
        $region18: #{tpu_custom_call.1} parent=11 // pred_check_branch
          %282 = sbr.rel (%p280) target = $region20
        $region19: #{tpu_custom_call.1} parent=11 // pred_region
          _
        $region20: #{tpu_custom_call.1} parent=11 // pred_fallthru
          _
        // Predicated region
        $region21: #{tpu_custom_call.1} parent=11 // pred_check
          %p283 = pneg %p122
        $region22: #{tpu_custom_call.1} parent=11 // pred_check_branch
          %285 = sbr.rel (%p283) target = $region24
        $region23: #{tpu_custom_call.1} parent=11 // pred_region
          _
        $region24: #{tpu_custom_call.1} parent=11 // pred_fallthru
          _
        // Predicated region
        $region25: #{tpu_custom_call.1} parent=11 // pred_check
          %p286 = pneg %p143
        $region26: #{tpu_custom_call.1} parent=11 // pred_check_branch
          %288 = sbr.rel (%p286) target = $region28
        $region27: #{tpu_custom_call.1} parent=11 // pred_region
          _
        $region28: #{tpu_custom_call.1} parent=11 // pred_fallthru
          _
        // Predicated region
        $region29: #{tpu_custom_call.1} parent=11 // pred_check
          %p289 = pneg %p164
        $region30: #{tpu_custom_call.1} parent=11 // pred_check_branch
          %291 = sbr.rel (%p289) target = $region32
        $region31: #{tpu_custom_call.1} parent=11 // pred_region
          _
        $region32: #{tpu_custom_call.1} parent=11 // pred_fallthru
          _
        // Predicated region
        $region33: #{tpu_custom_call.1} parent=11 // pred_check
          %p292 = pneg %p185
        $region34: #{tpu_custom_call.1} parent=11 // pred_check_branch
          %294 = sbr.rel (%p292) target = $region36
        $region35: #{tpu_custom_call.1} parent=11 // pred_region
          _
        $region36: #{tpu_custom_call.1} parent=11 // pred_fallthru
          _
        // Predicated region
        $region37: #{tpu_custom_call.1} parent=11 // pred_check
          %p295 = pneg %p206
        $region38: #{tpu_custom_call.1} parent=11 // pred_check_branch
          %297 = sbr.rel (%p295) target = $region40
        $region39: #{tpu_custom_call.1} parent=11 // pred_region
          _
        $region40: #{tpu_custom_call.1} parent=11 // pred_fallthru
          _
      $region12: #{tpu_custom_call.1} parent=5 // pred_fallthru
        _
      %p298 = scmp.lt.s32.totalorder %s19, 2
      // Predicated region
      $region41: #{tpu_custom_call.1} parent=5 // pred_check
        %p299 = pneg %p298
      $region42: #{tpu_custom_call.1} parent=5 // pred_check_branch
        %301 = sbr.rel (%p299) target = $region44
      $region43: #{tpu_custom_call.1} parent=5 // pred_region
        // Predicated region
        $region45: #{tpu_custom_call.1} parent=43 // pred_check
          %p302 = pneg %p53
        $region46: #{tpu_custom_call.1} parent=43 // pred_check_branch
          %304 = sbr.rel (%p302) target = $region48
        $region47: #{tpu_custom_call.1} parent=43 // pred_region
          %s305 = smul.u32 32, %s27
          %p306 = scmp.lt.s32.totalorder %s26, 1
          %s307 = scalar_select %p306, %s26, 1
          %p308 = scmp.lt.s32.totalorder %s305, 31
          %s309 = scalar_select %p308, %s305, 31
          %s310 = smul.addr %s307, 32
          %s311 = sadd.s32 %s309, %s310
          %s312 = smul.addr %s311, 8
          %s313 = scalar_lea.vmem %s0, %s312
          %s314 = smul.u32 32, %s27
        $region48: #{tpu_custom_call.1} parent=43 // pred_fallthru
          _
      $region44: #{tpu_custom_call.1} parent=5 // pred_fallthru
        _
      %p315 = scmp.le.s32.totalorder 1, %s19
      %p316 = scmp.lt.s32.totalorder %s19, 3
      %p317 = pnand %p315, %p316
      %p318 = pneg %p317
      // Predicated region
      $region49: #{tpu_custom_call.1} parent=5 // pred_check
        _
      $region50: #{tpu_custom_call.1} parent=5 // pred_check_branch
        %320 = sbr.rel (%p317) target = $region52
      $region51: #{tpu_custom_call.1} parent=5 // pred_region
        %s321 = ssub.s32 %s19, 1
        %s322 = smul.u32 32, %s29
        %p323 = scmp.lt.s32.totalorder %s28, 1
        %s324 = scalar_select %p323, %s28, 1
        %p325 = scmp.lt.s32.totalorder %s322, 31
        %s326 = scalar_select %p325, %s322, 31
        %s327 = smul.addr %s324, 32
        %s328 = sadd.s32 %s326, %s327
        %s329 = smul.addr %s328, 8
        %s330 = scalar_lea.vmem %s0, %s329
        %p331 = pneg %p59
        %p332 = pneg %p56
        %p333 = pneg %p80
        %p334 = pneg %p77
        %p335 = pneg %p101
        %p336 = pneg %p98
        %p337 = pneg %p122
        %p338 = pneg %p119
        %p339 = pneg %p143
        %p340 = pneg %p140
        %p341 = pneg %p164
        %p342 = pneg %p161
        %p343 = pneg %p185
        %p344 = pneg %p182
        %p345 = pneg %p206
        %p346 = pneg %p203
        %p347 = pneg %p234
        %p348 = pneg %p231
        %s349 = smul.u32 32, %s29
        %p350 = scmp.lt.s32.totalorder %s28, 1
        %s351 = scalar_select %p350, %s28, 1
        %p352 = scmp.lt.s32.totalorder %s349, 31
        %s353 = scalar_select %p352, %s349, 31
        %s354 = smul.addr %s351, 32
        %s355 = sadd.s32 %s353, %s354
        %s356 = smul.addr %s355, 8
        %s357 = scalar_lea.vmem %s8, %s356
        %p358 = pneg %p262
        %p359 = pneg %p259
        %s360 = sand.u32 %s249, 1
        %s361 = scalar_lea.sflag [#allocation3], %s360
        %s362 = sand.u32 %s249, 1
        %s363 = smul.addr %s362, 2
        %s364 = scalar_lea.vmem [#allocation2], %s363
        %s365 = smul.u32 32, %s29
        %p366 = scmp.lt.s32.totalorder %s28, 1
        %s367 = scalar_select %p366, %s28, 1
        %p368 = scmp.lt.s32.totalorder %s365, 31
        %s369 = scalar_select %p368, %s365, 31
        %s370 = smul.addr %s367, 32
        %s371 = sadd.s32 %s369, %s370
        %s372 = smul.addr %s371, 8
        %s373 = scalar_lea.vmem %s0, %s372
        %s374 = smul.u32 32, %s29
        %s375 = smul.u32 32, %s29
        %p376 = scmp.lt.s32.totalorder %s28, 1
        %s377 = scalar_select %p376, %s28, 1
        %p378 = scmp.lt.s32.totalorder %s375, 31
        %s379 = scalar_select %p378, %s375, 31
        %s380 = smul.addr %s377, 32
        %s381 = sadd.s32 %s379, %s380
        %s382 = smul.addr %s381, 8
        %s383 = scalar_lea.vmem %s8, %s382
        %s384 = smul.u32 32, %s29
        %p385 = scmp.eq.s32.totalorder %s29, 0
        %v386 = vld [vmem:[%s1] sm:$0xff]
        %v387 = vld [vmem:[%s1 + $0x8] sm:$0xff]
        %s388 = scalar_select %p385, 1, 0
        %v389 = vstv %s388
        %vm390 = vcmp.eq.s32.totalorder %v389, 1
        %v391 = vsel %vm390, 0.0, %v386
        %v392 = vsel %vm390, 0.0, %v387
        %v393 = vld [vmem:[%s2] sm:$0xff]
        %v394 = vld [vmem:[%s2 + $0x8] sm:$0xff]
        %v395 = vsel %vm390, 0.0, %v393
        %v396 = vsel %vm390, 0.0, %v394
        %v397 = vld [vmem:[%s373] sm:$0xff]
        %v398 = vld [vmem:[%s373 + $0x8] sm:$0xff]
        %v399 = vld [vmem:[%s373 + $0x10] sm:$0xff]
        %v400 = vld [vmem:[%s373 + $0x18] sm:$0xff]
        %v401 = vld [vmem:[%s373 + $0x20] sm:$0xff]
        %v402 = vld [vmem:[%s373 + $0x28] sm:$0xff]
        %v403 = vld [vmem:[%s373 + $0x30] sm:$0xff]
        %v404 = vld [vmem:[%s373 + $0x38] sm:$0xff]
        %v405 = vld [vmem:[%s373 + $0x40] sm:$0xff]
        %v406 = vld [vmem:[%s373 + $0x48] sm:$0xff]
        %v407 = vld [vmem:[%s373 + $0x50] sm:$0xff]
        %v408 = vld [vmem:[%s373 + $0x58] sm:$0xff]
        %v409 = vld [vmem:[%s373 + $0x60] sm:$0xff]
        %v410 = vld [vmem:[%s373 + $0x68] sm:$0xff]
        %v411 = vld [vmem:[%s373 + $0x70] sm:$0xff]
        %v412 = vld [vmem:[%s373 + $0x78] sm:$0xff]
        %v413 = vld [vmem:[%s373 + $0x80] sm:$0xff]
        %v414 = vld [vmem:[%s373 + $0x88] sm:$0xff]
        %v415 = vld [vmem:[%s373 + $0x90] sm:$0xff]
        %v416 = vld [vmem:[%s373 + $0x98] sm:$0xff]
        %v417 = vld [vmem:[%s373 + $0xa0] sm:$0xff]
        %v418 = vld [vmem:[%s373 + $0xa8] sm:$0xff]
        %v419 = vld [vmem:[%s373 + $0xb0] sm:$0xff]
        %v420 = vld [vmem:[%s373 + $0xb8] sm:$0xff]
        %v421 = vld [vmem:[%s373 + $0xc0] sm:$0xff]
        %v422 = vld [vmem:[%s373 + $0xc8] sm:$0xff]
        %v423 = vld [vmem:[%s373 + $0xd0] sm:$0xff]
        %v424 = vld [vmem:[%s373 + $0xd8] sm:$0xff]
        %v425 = vld [vmem:[%s373 + $0xe0] sm:$0xff]
        %v426 = vld [vmem:[%s373 + $0xe8] sm:$0xff]
        %v427 = vld [vmem:[%s373 + $0xf0] sm:$0xff]
        %v428 = vld [vmem:[%s373 + $0xf8] sm:$0xff]
        %v429 = vld [vmem:[%s3] sm:$0xff]
        %v430 = vld [vmem:[%s3 + $0x8] sm:$0xff]
        %v431 = vld [vmem:[%s3 + $0x10] sm:$0xff]
        %v432 = vld [vmem:[%s4] sm:$0x1]
        %v433 = vld [vmem:[%s5] sm:$0xff]
        %v434 = vld [vmem:[%s5 + $0x8] sm:$0xff]
        %v435 = vld [vmem:[%s5 + $0x10] sm:$0xff]
        %v436 = vld [vmem:[%s6] sm:$0xff]
        %v437 = vld [vmem:[%s6 + $0x8] sm:$0xff]
        %v438 = vld [vmem:[%s6 + $0x10] sm:$0xff]
        %v439 = vld [vmem:[%s6 + $0x18] sm:$0xff]
        %v440 = vld [vmem:[%s6 + $0x20] sm:$0xff]
        %v441 = vld [vmem:[%s6 + $0x28] sm:$0xff]
        %v442 = vld [vmem:[%s6 + $0x30] sm:$0xff]
        %v443 = vld [vmem:[%s6 + $0x38] sm:$0xff]
        %v444 = vld [vmem:[%s6 + $0x40] sm:$0xff]
        %v445 = vld [vmem:[%s6 + $0x48] sm:$0xff]
        %v446 = vld [vmem:[%s6 + $0x50] sm:$0xff]
        %v447 = vld [vmem:[%s6 + $0x58] sm:$0xff]
        %v448 = vld [vmem:[%s6 + $0x60] sm:$0xff]
        %v449 = vld [vmem:[%s6 + $0x68] sm:$0xff]
        %v450 = vld [vmem:[%s6 + $0x70] sm:$0xff]
        %v451 = vld [vmem:[%s6 + $0x78] sm:$0xff]
        %v452 = vld [vmem:[%s6 + $0x80] sm:$0xff]
        %v453 = vld [vmem:[%s6 + $0x88] sm:$0xff]
        %v454 = vld [vmem:[%s6 + $0x90] sm:$0xff]
        %v455 = vld [vmem:[%s6 + $0x98] sm:$0xff]
        %v456 = vld [vmem:[%s6 + $0xa0] sm:$0xff]
        %v457 = vld [vmem:[%s6 + $0xa8] sm:$0xff]
        %v458 = vld [vmem:[%s6 + $0xb0] sm:$0xff]
        %v459 = vld [vmem:[%s6 + $0xb8] sm:$0xff]
        %v460 = vld [vmem:[%s6 + $0xc0] sm:$0xff]
        %v461 = vld [vmem:[%s6 + $0xc8] sm:$0xff]
        %v462 = vld [vmem:[%s6 + $0xd0] sm:$0xff]
        %v463 = vld [vmem:[%s6 + $0xd8] sm:$0xff]
        %v464 = vld [vmem:[%s6 + $0xe0] sm:$0xff]
        %v465 = vld [vmem:[%s6 + $0xe8] sm:$0xff]
        %v466 = vld [vmem:[%s6 + $0xf0] sm:$0xff]
        %v467 = vld [vmem:[%s6 + $0xf8] sm:$0xff]
        %v468 = vld [vmem:[%s7] sm:$0xff]
        %v469 = vld [vmem:[%s7 + $0x8] sm:$0xff]
        %v470 = vld [vmem:[%s7 + $0x10] sm:$0xff]
        %v471 = vld [vmem:[%s7 + $0x18] sm:$0xff]
        %v472 = vld [vmem:[%s7 + $0x20] sm:$0xff]
        %v473 = vld [vmem:[%s7 + $0x28] sm:$0xff]
        %v474 = vld [vmem:[%s7 + $0x30] sm:$0xff]
        %v475 = vld [vmem:[%s7 + $0x38] sm:$0xff]
        %v476 = vld [vmem:[%s7 + $0x40] sm:$0xff]
        %v477 = vld [vmem:[%s7 + $0x48] sm:$0xff]
        %v478 = vld [vmem:[%s7 + $0x50] sm:$0xff]
        %v479 = vld [vmem:[%s7 + $0x58] sm:$0xff]
        %v480 = vld [vmem:[%s7 + $0x60] sm:$0xff]
        %v481 = vld [vmem:[%s7 + $0x68] sm:$0xff]
        %v482 = vld [vmem:[%s7 + $0x70] sm:$0xff]
        %v483 = vld [vmem:[%s7 + $0x78] sm:$0xff]
        %v484 = vld [vmem:[%s7 + $0x80] sm:$0xff]
        %v485 = vld [vmem:[%s7 + $0x88] sm:$0xff]
        %v486 = vld [vmem:[%s7 + $0x90] sm:$0xff]
        %v487 = vld [vmem:[%s7 + $0x98] sm:$0xff]
        %v488 = vld [vmem:[%s7 + $0xa0] sm:$0xff]
        %v489 = vld [vmem:[%s7 + $0xa8] sm:$0xff]
        %v490 = vld [vmem:[%s7 + $0xb0] sm:$0xff]
        %v491 = vld [vmem:[%s7 + $0xb8] sm:$0xff]
        %v492 = vld [vmem:[%s7 + $0xc0] sm:$0xff]
        %v493 = vld [vmem:[%s7 + $0xc8] sm:$0xff]
        %v494 = vld [vmem:[%s7 + $0xd0] sm:$0xff]
        %v495 = vld [vmem:[%s7 + $0xd8] sm:$0xff]
        %v496 = vld [vmem:[%s7 + $0xe0] sm:$0xff]
        %v497 = vld [vmem:[%s7 + $0xe8] sm:$0xff]
        %v498 = vld [vmem:[%s7 + $0xf0] sm:$0xff]
        %v499 = vld [vmem:[%s7 + $0xf8] sm:$0xff]
        %532 = vrot.lane.b32.xlu0 %v397, 8
        %v533 = vpop.permute.xlu0 %532
        %534 = vrot.lane.b32.xlu0 %v398, 8
        %v535 = vpop.permute.xlu0 %534
        %536 = vrot.lane.b32.xlu0 %v399, 8
        %v537 = vpop.permute.xlu0 %536
        %538 = vrot.lane.b32.xlu0 %v400, 8
        %v539 = vpop.permute.xlu0 %538
        %540 = vrot.lane.b32.xlu0 %v401, 8
        %v541 = vpop.permute.xlu0 %540
        %542 = vrot.lane.b32.xlu0 %v402, 8
        %v543 = vpop.permute.xlu0 %542
        %544 = vrot.lane.b32.xlu0 %v403, 8
        %v545 = vpop.permute.xlu0 %544
        %546 = vrot.lane.b32.xlu0 %v404, 8
        %v547 = vpop.permute.xlu0 %546
        %548 = vrot.lane.b32.xlu0 %v405, 8
        %v549 = vpop.permute.xlu0 %548
        %550 = vrot.lane.b32.xlu0 %v406, 8
        %v551 = vpop.permute.xlu0 %550
        %552 = vrot.lane.b32.xlu0 %v407, 8
        %v553 = vpop.permute.xlu0 %552
        %554 = vrot.lane.b32.xlu0 %v408, 8
        %v555 = vpop.permute.xlu0 %554
        %556 = vrot.lane.b32.xlu0 %v409, 8
        %v557 = vpop.permute.xlu0 %556
        %558 = vrot.lane.b32.xlu0 %v410, 8
        %v559 = vpop.permute.xlu0 %558
        %560 = vrot.lane.b32.xlu0 %v411, 8
        %v561 = vpop.permute.xlu0 %560
        %562 = vrot.lane.b32.xlu0 %v412, 8
        %v563 = vpop.permute.xlu0 %562
        %564 = vrot.lane.b32.xlu0 %v413, 8
        %v565 = vpop.permute.xlu0 %564
        %566 = vrot.lane.b32.xlu0 %v414, 8
        %v567 = vpop.permute.xlu0 %566
        %568 = vrot.lane.b32.xlu0 %v415, 8
        %v569 = vpop.permute.xlu0 %568
        %570 = vrot.lane.b32.xlu0 %v416, 8
        %v571 = vpop.permute.xlu0 %570
        %572 = vrot.lane.b32.xlu0 %v417, 8
        %v573 = vpop.permute.xlu0 %572
        %574 = vrot.lane.b32.xlu0 %v418, 8
        %v575 = vpop.permute.xlu0 %574
        %576 = vrot.lane.b32.xlu0 %v419, 8
        %v577 = vpop.permute.xlu0 %576
        %578 = vrot.lane.b32.xlu0 %v420, 8
        %v579 = vpop.permute.xlu0 %578
        %580 = vrot.lane.b32.xlu0 %v421, 8
        %v581 = vpop.permute.xlu0 %580
        %582 = vrot.lane.b32.xlu0 %v422, 8
        %v583 = vpop.permute.xlu0 %582
        %584 = vrot.lane.b32.xlu0 %v423, 8
        %v585 = vpop.permute.xlu0 %584
        %586 = vrot.lane.b32.xlu0 %v424, 8
        %v587 = vpop.permute.xlu0 %586
        %588 = vrot.lane.b32.xlu0 %v425, 8
        %v589 = vpop.permute.xlu0 %588
        %590 = vrot.lane.b32.xlu0 %v426, 8
        %v591 = vpop.permute.xlu0 %590
        %592 = vrot.lane.b32.xlu0 %v427, 8
        %v593 = vpop.permute.xlu0 %592
        %594 = vrot.lane.b32.xlu0 %v428, 8
        %v595 = vpop.permute.xlu0 %594
        %630 = vrot.lane.b32.xlu0 %v399, 16
        %v631 = vpop.permute.xlu0 %630
        %632 = vrot.lane.b32.xlu0 %v400, 16
        %v633 = vpop.permute.xlu0 %632
        %634 = vrot.lane.b32.xlu0 %v401, 16
        %v635 = vpop.permute.xlu0 %634
        %636 = vrot.lane.b32.xlu0 %v402, 16
        %v637 = vpop.permute.xlu0 %636
        %638 = vrot.lane.b32.xlu0 %v403, 16
        %v639 = vpop.permute.xlu0 %638
        %640 = vrot.lane.b32.xlu0 %v404, 16
        %v641 = vpop.permute.xlu0 %640
        %642 = vrot.lane.b32.xlu0 %v405, 16
        %v643 = vpop.permute.xlu0 %642
        %644 = vrot.lane.b32.xlu0 %v406, 16
        %v645 = vpop.permute.xlu0 %644
        %646 = vrot.lane.b32.xlu0 %v407, 16
        %v647 = vpop.permute.xlu0 %646
        %648 = vrot.lane.b32.xlu0 %v408, 16
        %v649 = vpop.permute.xlu0 %648
        %650 = vrot.lane.b32.xlu0 %v409, 16
        %v651 = vpop.permute.xlu0 %650
        %652 = vrot.lane.b32.xlu0 %v410, 16
        %v653 = vpop.permute.xlu0 %652
        %654 = vrot.lane.b32.xlu0 %v411, 16
        %v655 = vpop.permute.xlu0 %654
        %656 = vrot.lane.b32.xlu0 %v412, 16
        %v657 = vpop.permute.xlu0 %656
        %658 = vrot.lane.b32.xlu0 %v413, 16
        %v659 = vpop.permute.xlu0 %658
        %660 = vrot.lane.b32.xlu0 %v414, 16
        %v661 = vpop.permute.xlu0 %660
        %662 = vrot.lane.b32.xlu0 %v415, 16
        %v663 = vpop.permute.xlu0 %662
        %664 = vrot.lane.b32.xlu0 %v416, 16
        %v665 = vpop.permute.xlu0 %664
        %666 = vrot.lane.b32.xlu0 %v417, 16
        %v667 = vpop.permute.xlu0 %666
        %668 = vrot.lane.b32.xlu0 %v418, 16
        %v669 = vpop.permute.xlu0 %668
        %670 = vrot.lane.b32.xlu0 %v419, 16
        %v671 = vpop.permute.xlu0 %670
        %672 = vrot.lane.b32.xlu0 %v420, 16
        %v673 = vpop.permute.xlu0 %672
        %674 = vrot.lane.b32.xlu0 %v421, 16
        %v675 = vpop.permute.xlu0 %674
        %676 = vrot.lane.b32.xlu0 %v422, 16
        %v677 = vpop.permute.xlu0 %676
        %678 = vrot.lane.b32.xlu0 %v423, 16
        %v679 = vpop.permute.xlu0 %678
        %680 = vrot.lane.b32.xlu0 %v424, 16
        %v681 = vpop.permute.xlu0 %680
        %682 = vrot.lane.b32.xlu0 %v425, 16
        %v683 = vpop.permute.xlu0 %682
        %684 = vrot.lane.b32.xlu0 %v426, 16
        %v685 = vpop.permute.xlu0 %684
        %686 = vrot.lane.b32.xlu0 %v427, 16
        %v687 = vpop.permute.xlu0 %686
        %688 = vrot.lane.b32.xlu0 %v428, 16
        %v689 = vpop.permute.xlu0 %688
        %690 = vrot.lane.b32.xlu0 %v395, 16
        %v691 = vpop.permute.xlu0 %690
        %692 = vrot.lane.b32.xlu0 %v396, 16
        %v693 = vpop.permute.xlu0 %692
        %vm726 = vcmask 64512
        %v727 = vsel %vm726, %v391, %v533
        %v728 = vsel %vm726, %v392, %v535
        %v729 = vsel %vm726, %v397, %v537
        %v730 = vsel %vm726, %v398, %v539
        %v731 = vsel %vm726, %v399, %v541
        %v732 = vsel %vm726, %v400, %v543
        %v733 = vsel %vm726, %v401, %v545
        %v734 = vsel %vm726, %v402, %v547
        %v735 = vsel %vm726, %v403, %v549
        %v736 = vsel %vm726, %v404, %v551
        %v737 = vsel %vm726, %v405, %v553
        %v738 = vsel %vm726, %v406, %v555
        %v739 = vsel %vm726, %v407, %v557
        %v740 = vsel %vm726, %v408, %v559
        %v741 = vsel %vm726, %v409, %v561
        %v742 = vsel %vm726, %v410, %v563
        %v743 = vsel %vm726, %v411, %v565
        %v744 = vsel %vm726, %v412, %v567
        %v745 = vsel %vm726, %v413, %v569
        %v746 = vsel %vm726, %v414, %v571
        %v747 = vsel %vm726, %v415, %v573
        %v748 = vsel %vm726, %v416, %v575
        %v749 = vsel %vm726, %v417, %v577
        %v750 = vsel %vm726, %v418, %v579
        %v751 = vsel %vm726, %v419, %v581
        %v752 = vsel %vm726, %v420, %v583
        %v753 = vsel %vm726, %v421, %v585
        %v754 = vsel %vm726, %v422, %v587
        %v755 = vsel %vm726, %v423, %v589
        %v756 = vsel %vm726, %v424, %v591
        %v757 = vsel %vm726, %v425, %v593
        %v758 = vsel %vm726, %v426, %v595
        %vm759 = vcmask 130048
        %v760 = vsel %vm759, %v727, %v631
        %v761 = vsel %vm759, %v728, %v633
        %v762 = vsel %vm759, %v729, %v635
        %v763 = vsel %vm759, %v730, %v637
        %v764 = vsel %vm759, %v731, %v639
        %v765 = vsel %vm759, %v732, %v641
        %v766 = vsel %vm759, %v733, %v643
        %v767 = vsel %vm759, %v734, %v645
        %v768 = vsel %vm759, %v735, %v647
        %v769 = vsel %vm759, %v736, %v649
        %v770 = vsel %vm759, %v737, %v651
        %v771 = vsel %vm759, %v738, %v653
        %v772 = vsel %vm759, %v739, %v655
        %v773 = vsel %vm759, %v740, %v657
        %v774 = vsel %vm759, %v741, %v659
        %v775 = vsel %vm759, %v742, %v661
        %v776 = vsel %vm759, %v743, %v663
        %v777 = vsel %vm759, %v744, %v665
        %v778 = vsel %vm759, %v745, %v667
        %v779 = vsel %vm759, %v746, %v669
        %v780 = vsel %vm759, %v747, %v671
        %v781 = vsel %vm759, %v748, %v673
        %v782 = vsel %vm759, %v749, %v675
        %v783 = vsel %vm759, %v750, %v677
        %v784 = vsel %vm759, %v751, %v679
        %v785 = vsel %vm759, %v752, %v681
        %v786 = vsel %vm759, %v753, %v683
        %v787 = vsel %vm759, %v754, %v685
        %v788 = vsel %vm759, %v755, %v687
        %v789 = vsel %vm759, %v756, %v689
        %v790 = vsel %vm759, %v757, %v691
        %v791 = vsel %vm759, %v758, %v693
        %v793 = vlaneseq
        %v794 = vshrl.u32 %v793, 7
        %v795 = vsub.s32 0, %v794
        %v796 = vrot.slane %v432, %v795
        %vm798 = vcmask 195584
        %v800 = vsel %vm798, %v760, 0
        %v803 = vsel %vm798, %v761, 0
        %v806 = vsel %vm798, %v762, 0
        %v809 = vsel %vm798, %v763, 0
        %v812 = vsel %vm798, %v764, 0
        %v815 = vsel %vm798, %v765, 0
        %v818 = vsel %vm798, %v766, 0
        %v821 = vsel %vm798, %v767, 0
        %v824 = vsel %vm798, %v768, 0
        %v827 = vsel %vm798, %v769, 0
        %v830 = vsel %vm798, %v770, 0
        %v833 = vsel %vm798, %v771, 0
        %v836 = vsel %vm798, %v772, 0
        %v839 = vsel %vm798, %v773, 0
        %v842 = vsel %vm798, %v774, 0
        %v845 = vsel %vm798, %v775, 0
        %v848 = vsel %vm798, %v776, 0
        %v851 = vsel %vm798, %v777, 0
        %v854 = vsel %vm798, %v778, 0
        %v857 = vsel %vm798, %v779, 0
        %v860 = vsel %vm798, %v780, 0
        %v863 = vsel %vm798, %v781, 0
        %v866 = vsel %vm798, %v782, 0
        %v869 = vsel %vm798, %v783, 0
        %v872 = vsel %vm798, %v784, 0
        %v875 = vsel %vm798, %v785, 0
        %v878 = vsel %vm798, %v786, 0
        %v881 = vsel %vm798, %v787, 0
        %v884 = vsel %vm798, %v788, 0
        %v887 = vsel %vm798, %v789, 0
        %v890 = vsel %vm798, %v790, 0
        %v893 = vsel %vm798, %v791, 0
        %895 = vmatprep.subr.mxu0 0.0
        %896 = vmatpush1.msra.mxu0 %v429
        %897 = vmatprep.subr.mxu0 0.0
        %898 = vmatpush1.msra.mxu0 %v430
        %899 = vmatprep.subr.mxu0 0.0
        %900 = vmatpush1.msra.mxu0 %v431
        %901 = vmatprep.subr.mxu0 0.0
        %902 = vmatpush1.msra.mxu0 0.0
        %903 = vmatprep.subr.mxu0 0.0
        %904 = vmatpush1.msra.mxu0 0.0
        %905 = vmatprep.subr.mxu0 0.0
        %906 = vmatpush1.msra.mxu0 0.0
        %907 = vmatprep.subr.mxu0 0.0
        %908 = vmatpush1.msra.mxu0 0.0
        %909 = vmatprep.subr.mxu0 0.0
        %910 = vmatpush1.msra.mxu0 0.0
        %911 = vmatprep.subr.mxu0 0.0
        %912 = vmatpush1.msra.mxu0 0.0
        %913 = vmatprep.subr.mxu0 0.0
        %914 = vmatpush1.msra.mxu0 0.0
        %915 = vmatprep.subr.mxu0 0.0
        %916 = vmatpush1.msra.mxu0 0.0
        %917 = vmatprep.subr.mxu0 0.0
        %918 = vmatpush1.msra.mxu0 0.0
        %919 = vmatprep.subr.mxu0 0.0
        %920 = vmatpush1.msra.mxu0 0.0
        %921 = vmatprep.subr.mxu0 0.0
        %922 = vmatpush1.msra.mxu0 0.0
        %923 = vmatprep.subr.mxu0 0.0
        %924 = vmatpush1.msra.mxu0 0.0
        %925 = vmatprep.subr.mxu0 0.0
        %926 = vmatpush1.msra.mxu0 0.0
        %927 = vmatprep.subr.mxu0 0.0
        %928 = vmatpush1.msra.mxu0 0.0
        %929 = vmatprep.subr.mxu0 0.0
        %930 = vmatpush1.msra.mxu0 0.0
        %931 = vmatprep.subr.mxu0 0.0
        %932 = vmatpush1.msra.mxu0 0.0
        %933 = vmatprep.subr.mxu0 0.0
        %934 = vmatpush1.msra.mxu0 0.0
        %935 = vmatprep.subr.mxu0 0.0
        %936 = vmatpush1.msra.mxu0 0.0
        %937 = vmatprep.subr.mxu0 0.0
        %938 = vmatpush1.msra.mxu0 0.0
        %939 = vmatprep.subr.mxu0 0.0
        %940 = vmatpush1.msra.mxu0 0.0
        %941 = vmatprep.subr.mxu0 0.0
        %942 = vmatpush1.msra.mxu0 0.0
        %943 = vmatprep.subr.mxu0 0.0
        %944 = vmatpush1.msra.mxu0 0.0
        %945 = vmatprep.subr.mxu0 0.0
        %946 = vmatpush1.msra.mxu0 0.0
        %947 = vmatprep.subr.mxu0 0.0
        %948 = vmatpush1.msra.mxu0 0.0
        %949 = vmatprep.subr.mxu0 0.0
        %950 = vmatpush1.msra.mxu0 0.0
        %951 = vmatprep.subr.mxu0 0.0
        %952 = vmatpush1.msra.mxu0 0.0
        %953 = vmatprep.subr.mxu0 0.0
        %954 = vmatpush1.msra.mxu0 0.0
        %955 = vmatprep.subr.mxu0 0.0
        %956 = vmatpush1.msra.mxu0 0.0
        %957 = vmatprep.subr.mxu0 0.0
        %958 = vmatpush1.msra.mxu0 0.0
        %959 = vmatprep.mubr.f32.mxu0 0.0
        %960 = vmatmul.mubr.f32.gmra.mrb[0].mxu0 %v800
        %v961 = vpop.f32.mrb[0].mxu0
        %v962 = vadd.f32 %v796, %v961
        %v963 = vpop.f32.mrb[0].mxu0
        %964 = vmatprep.mubr.f32.mxu0 0.0
        %965 = vmatmul.mubr.f32.gmra.mrb[0].mxu0 %v803
        %v966 = vpop.f32.mrb[0].mxu0
        %v967 = vadd.f32 %v796, %v966
        %v968 = vpop.f32.mrb[0].mxu0
        %969 = vmatprep.mubr.f32.mxu0 0.0
        %970 = vmatmul.mubr.f32.gmra.mrb[0].mxu0 %v806
        %v971 = vpop.f32.mrb[0].mxu0
        %v972 = vadd.f32 %v796, %v971
        %v973 = vpop.f32.mrb[0].mxu0
        %974 = vmatprep.mubr.f32.mxu0 0.0
        %975 = vmatmul.mubr.f32.gmra.mrb[0].mxu0 %v809
        %v976 = vpop.f32.mrb[0].mxu0
        %v977 = vadd.f32 %v796, %v976
        %v978 = vpop.f32.mrb[0].mxu0
        %979 = vmatprep.mubr.f32.mxu0 0.0
        %980 = vmatmul.mubr.f32.gmra.mrb[0].mxu0 %v812
        %v981 = vpop.f32.mrb[0].mxu0
        %v982 = vadd.f32 %v796, %v981
        %v983 = vpop.f32.mrb[0].mxu0
        %984 = vmatprep.mubr.f32.mxu0 0.0
        %985 = vmatmul.mubr.f32.gmra.mrb[0].mxu0 %v815
        %v986 = vpop.f32.mrb[0].mxu0
        %v987 = vadd.f32 %v796, %v986
        %v988 = vpop.f32.mrb[0].mxu0
        %989 = vmatprep.mubr.f32.mxu0 0.0
        %990 = vmatmul.mubr.f32.gmra.mrb[0].mxu0 %v818
        %v991 = vpop.f32.mrb[0].mxu0
        %v992 = vadd.f32 %v796, %v991
        %v993 = vpop.f32.mrb[0].mxu0
        %994 = vmatprep.mubr.f32.mxu0 0.0
        %995 = vmatmul.mubr.f32.gmra.mrb[0].mxu0 %v821
        %v996 = vpop.f32.mrb[0].mxu0
        %v997 = vadd.f32 %v796, %v996
        %v998 = vpop.f32.mrb[0].mxu0
        %999 = vmatprep.mubr.f32.mxu0 0.0
        %1000 = vmatmul.mubr.f32.gmra.mrb[0].mxu0 %v824
        %v1001 = vpop.f32.mrb[0].mxu0
        %v1002 = vadd.f32 %v796, %v1001
        %v1003 = vpop.f32.mrb[0].mxu0
        %1004 = vmatprep.mubr.f32.mxu0 0.0
        %1005 = vmatmul.mubr.f32.gmra.mrb[0].mxu0 %v827
        %v1006 = vpop.f32.mrb[0].mxu0
        %v1007 = vadd.f32 %v796, %v1006
        %v1008 = vpop.f32.mrb[0].mxu0
        %1009 = vmatprep.mubr.f32.mxu0 0.0
        %1010 = vmatmul.mubr.f32.gmra.mrb[0].mxu0 %v830
        %v1011 = vpop.f32.mrb[0].mxu0
        %v1012 = vadd.f32 %v796, %v1011
        %v1013 = vpop.f32.mrb[0].mxu0
        %1014 = vmatprep.mubr.f32.mxu0 0.0
        %1015 = vmatmul.mubr.f32.gmra.mrb[0].mxu0 %v833
        %v1016 = vpop.f32.mrb[0].mxu0
        %v1017 = vadd.f32 %v796, %v1016
        %v1018 = vpop.f32.mrb[0].mxu0
        %1019 = vmatprep.mubr.f32.mxu0 0.0
        %1020 = vmatmul.mubr.f32.gmra.mrb[0].mxu0 %v836
        %v1021 = vpop.f32.mrb[0].mxu0
        %v1022 = vadd.f32 %v796, %v1021
        %v1023 = vpop.f32.mrb[0].mxu0
        %1024 = vmatprep.mubr.f32.mxu0 0.0
        %1025 = vmatmul.mubr.f32.gmra.mrb[0].mxu0 %v839
        %v1026 = vpop.f32.mrb[0].mxu0
        %v1027 = vadd.f32 %v796, %v1026
        %v1028 = vpop.f32.mrb[0].mxu0
        %1029 = vmatprep.mubr.f32.mxu0 0.0
        %1030 = vmatmul.mubr.f32.gmra.mrb[0].mxu0 %v842
        %v1031 = vpop.f32.mrb[0].mxu0
        %v1032 = vadd.f32 %v796, %v1031
        %v1033 = vpop.f32.mrb[0].mxu0
        %1034 = vmatprep.mubr.f32.mxu0 0.0
        %1035 = vmatmul.mubr.f32.gmra.mrb[0].mxu0 %v845
        %v1036 = vpop.f32.mrb[0].mxu0
        %v1037 = vadd.f32 %v796, %v1036
        %v1038 = vpop.f32.mrb[0].mxu0
        %1039 = vmatprep.mubr.f32.mxu0 0.0
        %1040 = vmatmul.mubr.f32.gmra.mrb[0].mxu0 %v848
        %v1041 = vpop.f32.mrb[0].mxu0
        %v1042 = vadd.f32 %v796, %v1041
        %v1043 = vpop.f32.mrb[0].mxu0
        %1044 = vmatprep.mubr.f32.mxu0 0.0
        %1045 = vmatmul.mubr.f32.gmra.mrb[0].mxu0 %v851
        %v1046 = vpop.f32.mrb[0].mxu0
        %v1047 = vadd.f32 %v796, %v1046
        %v1048 = vpop.f32.mrb[0].mxu0
        %1049 = vmatprep.mubr.f32.mxu0 0.0
        %1050 = vmatmul.mubr.f32.gmra.mrb[0].mxu0 %v854
        %v1051 = vpop.f32.mrb[0].mxu0
        %v1052 = vadd.f32 %v796, %v1051
        %v1053 = vpop.f32.mrb[0].mxu0
        %1054 = vmatprep.mubr.f32.mxu0 0.0
        %1055 = vmatmul.mubr.f32.gmra.mrb[0].mxu0 %v857
        %v1056 = vpop.f32.mrb[0].mxu0
        %v1057 = vadd.f32 %v796, %v1056
        %v1058 = vpop.f32.mrb[0].mxu0
        %1059 = vmatprep.mubr.f32.mxu0 0.0
        %1060 = vmatmul.mubr.f32.gmra.mrb[0].mxu0 %v860
        %v1061 = vpop.f32.mrb[0].mxu0
        %v1062 = vadd.f32 %v796, %v1061
        %v1063 = vpop.f32.mrb[0].mxu0
        %1064 = vmatprep.mubr.f32.mxu0 0.0
        %1065 = vmatmul.mubr.f32.gmra.mrb[0].mxu0 %v863
        %v1066 = vpop.f32.mrb[0].mxu0
        %v1067 = vadd.f32 %v796, %v1066
        %v1068 = vpop.f32.mrb[0].mxu0
        %1069 = vmatprep.mubr.f32.mxu0 0.0
        %1070 = vmatmul.mubr.f32.gmra.mrb[0].mxu0 %v866
        %v1071 = vpop.f32.mrb[0].mxu0
        %v1072 = vadd.f32 %v796, %v1071
        %v1073 = vpop.f32.mrb[0].mxu0
        %1074 = vmatprep.mubr.f32.mxu0 0.0
        %1075 = vmatmul.mubr.f32.gmra.mrb[0].mxu0 %v869
        %v1076 = vpop.f32.mrb[0].mxu0
        %v1077 = vadd.f32 %v796, %v1076
        %v1078 = vpop.f32.mrb[0].mxu0
        %1079 = vmatprep.mubr.f32.mxu0 0.0
        %1080 = vmatmul.mubr.f32.gmra.mrb[0].mxu0 %v872
        %v1081 = vpop.f32.mrb[0].mxu0
        %v1082 = vadd.f32 %v796, %v1081
        %v1083 = vpop.f32.mrb[0].mxu0
        %1084 = vmatprep.mubr.f32.mxu0 0.0
        %1085 = vmatmul.mubr.f32.gmra.mrb[0].mxu0 %v875
        %v1086 = vpop.f32.mrb[0].mxu0
        %v1087 = vadd.f32 %v796, %v1086
        %v1088 = vpop.f32.mrb[0].mxu0
        %1089 = vmatprep.mubr.f32.mxu0 0.0
        %1090 = vmatmul.mubr.f32.gmra.mrb[0].mxu0 %v878
        %v1091 = vpop.f32.mrb[0].mxu0
        %v1092 = vadd.f32 %v796, %v1091
        %v1093 = vpop.f32.mrb[0].mxu0
        %1094 = vmatprep.mubr.f32.mxu0 0.0
        %1095 = vmatmul.mubr.f32.gmra.mrb[0].mxu0 %v881
        %v1096 = vpop.f32.mrb[0].mxu0
        %v1097 = vadd.f32 %v796, %v1096
        %v1098 = vpop.f32.mrb[0].mxu0
        %1099 = vmatprep.mubr.f32.mxu0 0.0
        %1100 = vmatmul.mubr.f32.gmra.mrb[0].mxu0 %v884
        %v1101 = vpop.f32.mrb[0].mxu0
        %v1102 = vadd.f32 %v796, %v1101
        %v1103 = vpop.f32.mrb[0].mxu0
        %1104 = vmatprep.mubr.f32.mxu0 0.0
        %1105 = vmatmul.mubr.f32.gmra.mrb[0].mxu0 %v887
        %v1106 = vpop.f32.mrb[0].mxu0
        %v1107 = vadd.f32 %v796, %v1106
        %v1108 = vpop.f32.mrb[0].mxu0
        %1109 = vmatprep.mubr.f32.mxu0 0.0
        %1110 = vmatmul.mubr.f32.gmra.mrb[0].mxu0 %v890
        %v1111 = vpop.f32.mrb[0].mxu0
        %v1112 = vadd.f32 %v796, %v1111
        %v1113 = vpop.f32.mrb[0].mxu0
        %1114 = vmatprep.mubr.f32.mxu0 0.0
        %1115 = vmatmul.mubr.f32.gmra.mrb[0].mxu0 %v893
        %v1116 = vpop.f32.mrb[0].mxu0
        %v1117 = vadd.f32 %v796, %v1116
        %v1118 = vpop.f32.mrb[0].mxu0
        %1119 = vdwg.mxu0
        %v1120 = vmax.f32 %v962, 0.0
        %v1121 = vmax.f32 %v967, 0.0
        %v1122 = vmax.f32 %v972, 0.0
        %v1123 = vmax.f32 %v977, 0.0
        %v1124 = vmax.f32 %v982, 0.0
        %v1125 = vmax.f32 %v987, 0.0
        %v1126 = vmax.f32 %v992, 0.0
        %v1127 = vmax.f32 %v997, 0.0
        %v1128 = vmax.f32 %v1002, 0.0
        %v1129 = vmax.f32 %v1007, 0.0
        %v1130 = vmax.f32 %v1012, 0.0
        %v1131 = vmax.f32 %v1017, 0.0
        %v1132 = vmax.f32 %v1022, 0.0
        %v1133 = vmax.f32 %v1027, 0.0
        %v1134 = vmax.f32 %v1032, 0.0
        %v1135 = vmax.f32 %v1037, 0.0
        %v1136 = vmax.f32 %v1042, 0.0
        %v1137 = vmax.f32 %v1047, 0.0
        %v1138 = vmax.f32 %v1052, 0.0
        %v1139 = vmax.f32 %v1057, 0.0
        %v1140 = vmax.f32 %v1062, 0.0
        %v1141 = vmax.f32 %v1067, 0.0
        %v1142 = vmax.f32 %v1072, 0.0
        %v1143 = vmax.f32 %v1077, 0.0
        %v1144 = vmax.f32 %v1082, 0.0
        %v1145 = vmax.f32 %v1087, 0.0
        %v1146 = vmax.f32 %v1092, 0.0
        %v1147 = vmax.f32 %v1097, 0.0
        %v1148 = vmax.f32 %v1102, 0.0
        %v1149 = vmax.f32 %v1107, 0.0
        %v1150 = vmax.f32 %v1112, 0.0
        %v1151 = vmax.f32 %v1117, 0.0
        %v1152 = vrot.slane %v1120, 7
        %v1153 = vrot.slane %v1121, 7
        %v1154 = vrot.slane %v1122, 7
        %v1155 = vrot.slane %v1123, 7
        %v1156 = vrot.slane %v1124, 7
        %v1157 = vrot.slane %v1125, 7
        %v1158 = vrot.slane %v1126, 7
        %v1159 = vrot.slane %v1127, 7
        %v1160 = vrot.slane %v1128, 7
        %v1161 = vrot.slane %v1129, 7
        %v1162 = vrot.slane %v1130, 7
        %v1163 = vrot.slane %v1131, 7
        %v1164 = vrot.slane %v1132, 7
        %v1165 = vrot.slane %v1133, 7
        %v1166 = vrot.slane %v1134, 7
        %v1167 = vrot.slane %v1135, 7
        %v1168 = vrot.slane %v1136, 7
        %v1169 = vrot.slane %v1137, 7
        %v1170 = vrot.slane %v1138, 7
        %v1171 = vrot.slane %v1139, 7
        %v1172 = vrot.slane %v1140, 7
        %v1173 = vrot.slane %v1141, 7
        %v1174 = vrot.slane %v1142, 7
        %v1175 = vrot.slane %v1143, 7
        %v1176 = vrot.slane %v1144, 7
        %v1177 = vrot.slane %v1145, 7
        %v1178 = vrot.slane %v1146, 7
        %v1179 = vrot.slane %v1147, 7
        %v1180 = vrot.slane %v1148, 7
        %v1181 = vrot.slane %v1149, 7
        %v1182 = vrot.slane %v1150, 7
        %v1183 = vrot.slane %v1151, 7
        %v1184 = vlaneseq
        %v1185 = vshrl.u32 %v1184, 7
        %vm1186 = vcmp.lt.s32.totalorder %v1185, 1
        %v1187 = vsel %vm1186, %v1182, %v1183
        %v1188 = vsel %vm1186, %v1181, %v1182
        %v1189 = vsel %vm1186, %v1180, %v1181
        %v1190 = vsel %vm1186, %v1179, %v1180
        %v1191 = vsel %vm1186, %v1178, %v1179
        %v1192 = vsel %vm1186, %v1177, %v1178
        %v1193 = vsel %vm1186, %v1176, %v1177
        %v1194 = vsel %vm1186, %v1175, %v1176
        %v1195 = vsel %vm1186, %v1174, %v1175
        %v1196 = vsel %vm1186, %v1173, %v1174
        %v1197 = vsel %vm1186, %v1172, %v1173
        %v1198 = vsel %vm1186, %v1171, %v1172
        %v1199 = vsel %vm1186, %v1170, %v1171
        %v1200 = vsel %vm1186, %v1169, %v1170
        %v1201 = vsel %vm1186, %v1168, %v1169
        %v1202 = vsel %vm1186, %v1167, %v1168
        %v1203 = vsel %vm1186, %v1166, %v1167
        %v1204 = vsel %vm1186, %v1165, %v1166
        %v1205 = vsel %vm1186, %v1164, %v1165
        %v1206 = vsel %vm1186, %v1163, %v1164
        %v1207 = vsel %vm1186, %v1162, %v1163
        %v1208 = vsel %vm1186, %v1161, %v1162
        %v1209 = vsel %vm1186, %v1160, %v1161
        %v1210 = vsel %vm1186, %v1159, %v1160
        %v1211 = vsel %vm1186, %v1158, %v1159
        %v1212 = vsel %vm1186, %v1157, %v1158
        %v1213 = vsel %vm1186, %v1156, %v1157
        %v1214 = vsel %vm1186, %v1155, %v1156
        %v1215 = vsel %vm1186, %v1154, %v1155
        %v1216 = vsel %vm1186, %v1153, %v1154
        %v1217 = vsel %vm1186, %v1152, %v1153
        %v1218 = vsel %vm1186, %v1183, %v1152
        %1220 = vset.pattern.permute.xlu0 0
        %1221 = vperm.xlu0 %1220, %v436
        %v1222 = vpop.permute.xlu0 %1221
        %1225 = vset.pattern.permute.xlu0 0
        %1226 = vperm.xlu0 %1225, %v437
        %v1227 = vpop.permute.xlu0 %1226
        %1230 = vset.pattern.permute.xlu0 0
        %1231 = vperm.xlu0 %1230, %v438
        %v1232 = vpop.permute.xlu0 %1231
        %1235 = vset.pattern.permute.xlu0 0
        %1236 = vperm.xlu0 %1235, %v439
        %v1237 = vpop.permute.xlu0 %1236
        %1240 = vset.pattern.permute.xlu0 0
        %1241 = vperm.xlu0 %1240, %v440
        %v1242 = vpop.permute.xlu0 %1241
        %1245 = vset.pattern.permute.xlu0 0
        %1246 = vperm.xlu0 %1245, %v441
        %v1247 = vpop.permute.xlu0 %1246
        %1250 = vset.pattern.permute.xlu0 0
        %1251 = vperm.xlu0 %1250, %v442
        %v1252 = vpop.permute.xlu0 %1251
        %1255 = vset.pattern.permute.xlu0 0
        %1256 = vperm.xlu0 %1255, %v443
        %v1257 = vpop.permute.xlu0 %1256
        %1260 = vset.pattern.permute.xlu0 0
        %1261 = vperm.xlu0 %1260, %v444
        %v1262 = vpop.permute.xlu0 %1261
        %1265 = vset.pattern.permute.xlu0 0
        %1266 = vperm.xlu0 %1265, %v445
        %v1267 = vpop.permute.xlu0 %1266
        %1270 = vset.pattern.permute.xlu0 0
        %1271 = vperm.xlu0 %1270, %v446
        %v1272 = vpop.permute.xlu0 %1271
        %1275 = vset.pattern.permute.xlu0 0
        %1276 = vperm.xlu0 %1275, %v447
        %v1277 = vpop.permute.xlu0 %1276
        %1280 = vset.pattern.permute.xlu0 0
        %1281 = vperm.xlu0 %1280, %v448
        %v1282 = vpop.permute.xlu0 %1281
        %1285 = vset.pattern.permute.xlu0 0
        %1286 = vperm.xlu0 %1285, %v449
        %v1287 = vpop.permute.xlu0 %1286
        %1290 = vset.pattern.permute.xlu0 0
        %1291 = vperm.xlu0 %1290, %v450
        %v1292 = vpop.permute.xlu0 %1291
        %1295 = vset.pattern.permute.xlu0 0
        %1296 = vperm.xlu0 %1295, %v451
        %v1297 = vpop.permute.xlu0 %1296
        %1300 = vset.pattern.permute.xlu0 0
        %1301 = vperm.xlu0 %1300, %v452
        %v1302 = vpop.permute.xlu0 %1301
        %1305 = vset.pattern.permute.xlu0 0
        %1306 = vperm.xlu0 %1305, %v453
        %v1307 = vpop.permute.xlu0 %1306
        %1310 = vset.pattern.permute.xlu0 0
        %1311 = vperm.xlu0 %1310, %v454
        %v1312 = vpop.permute.xlu0 %1311
        %1315 = vset.pattern.permute.xlu0 0
        %1316 = vperm.xlu0 %1315, %v455
        %v1317 = vpop.permute.xlu0 %1316
        %1320 = vset.pattern.permute.xlu0 0
        %1321 = vperm.xlu0 %1320, %v456
        %v1322 = vpop.permute.xlu0 %1321
        %1325 = vset.pattern.permute.xlu0 0
        %1326 = vperm.xlu0 %1325, %v457
        %v1327 = vpop.permute.xlu0 %1326
        %1330 = vset.pattern.permute.xlu0 0
        %1331 = vperm.xlu0 %1330, %v458
        %v1332 = vpop.permute.xlu0 %1331
        %1335 = vset.pattern.permute.xlu0 0
        %1336 = vperm.xlu0 %1335, %v459
        %v1337 = vpop.permute.xlu0 %1336
        %1340 = vset.pattern.permute.xlu0 0
        %1341 = vperm.xlu0 %1340, %v460
        %v1342 = vpop.permute.xlu0 %1341
        %1345 = vset.pattern.permute.xlu0 0
        %1346 = vperm.xlu0 %1345, %v461
        %v1347 = vpop.permute.xlu0 %1346
        %1350 = vset.pattern.permute.xlu0 0
        %1351 = vperm.xlu0 %1350, %v462
        %v1352 = vpop.permute.xlu0 %1351
        %1355 = vset.pattern.permute.xlu0 0
        %1356 = vperm.xlu0 %1355, %v463
        %v1357 = vpop.permute.xlu0 %1356
        %1360 = vset.pattern.permute.xlu0 0
        %1361 = vperm.xlu0 %1360, %v464
        %v1362 = vpop.permute.xlu0 %1361
        %1365 = vset.pattern.permute.xlu0 0
        %1366 = vperm.xlu0 %1365, %v465
        %v1367 = vpop.permute.xlu0 %1366
        %1370 = vset.pattern.permute.xlu0 0
        %1371 = vperm.xlu0 %1370, %v466
        %v1372 = vpop.permute.xlu0 %1371
        %1375 = vset.pattern.permute.xlu0 0
        %1376 = vperm.xlu0 %1375, %v467
        %v1377 = vpop.permute.xlu0 %1376
        %v1379 = vmul.f32 %v1218, %v1222
        %v1380 = vmul.f32 %v1217, %v1227
        %v1381 = vmul.f32 %v1216, %v1232
        %v1382 = vmul.f32 %v1215, %v1237
        %v1383 = vmul.f32 %v1214, %v1242
        %v1384 = vmul.f32 %v1213, %v1247
        %v1385 = vmul.f32 %v1212, %v1252
        %v1386 = vmul.f32 %v1211, %v1257
        %v1387 = vmul.f32 %v1210, %v1262
        %v1388 = vmul.f32 %v1209, %v1267
        %v1389 = vmul.f32 %v1208, %v1272
        %v1390 = vmul.f32 %v1207, %v1277
        %v1391 = vmul.f32 %v1206, %v1282
        %v1392 = vmul.f32 %v1205, %v1287
        %v1393 = vmul.f32 %v1204, %v1292
        %v1394 = vmul.f32 %v1203, %v1297
        %v1395 = vmul.f32 %v1202, %v1302
        %v1396 = vmul.f32 %v1201, %v1307
        %v1397 = vmul.f32 %v1200, %v1312
        %v1398 = vmul.f32 %v1199, %v1317
        %v1399 = vmul.f32 %v1198, %v1322
        %v1400 = vmul.f32 %v1197, %v1327
        %v1401 = vmul.f32 %v1196, %v1332
        %v1402 = vmul.f32 %v1195, %v1337
        %v1403 = vmul.f32 %v1194, %v1342
        %v1404 = vmul.f32 %v1193, %v1347
        %v1405 = vmul.f32 %v1192, %v1352
        %v1406 = vmul.f32 %v1191, %v1357
        %v1407 = vmul.f32 %v1190, %v1362
        %v1408 = vmul.f32 %v1189, %v1367
        %v1409 = vmul.f32 %v1188, %v1372
        %v1410 = vmul.f32 %v1187, %v1377
        %v1411 = vrot.slane %v1120, 1
        %v1412 = vrot.slane %v1121, 1
        %v1413 = vrot.slane %v1122, 1
        %v1414 = vrot.slane %v1123, 1
        %v1415 = vrot.slane %v1124, 1
        %v1416 = vrot.slane %v1125, 1
        %v1417 = vrot.slane %v1126, 1
        %v1418 = vrot.slane %v1127, 1
        %v1419 = vrot.slane %v1128, 1
        %v1420 = vrot.slane %v1129, 1
        %v1421 = vrot.slane %v1130, 1
        %v1422 = vrot.slane %v1131, 1
        %v1423 = vrot.slane %v1132, 1
        %v1424 = vrot.slane %v1133, 1
        %v1425 = vrot.slane %v1134, 1
        %v1426 = vrot.slane %v1135, 1
        %v1427 = vrot.slane %v1136, 1
        %v1428 = vrot.slane %v1137, 1
        %v1429 = vrot.slane %v1138, 1
        %v1430 = vrot.slane %v1139, 1
        %v1431 = vrot.slane %v1140, 1
        %v1432 = vrot.slane %v1141, 1
        %v1433 = vrot.slane %v1142, 1
        %v1434 = vrot.slane %v1143, 1
        %v1435 = vrot.slane %v1144, 1
        %v1436 = vrot.slane %v1145, 1
        %v1437 = vrot.slane %v1146, 1
        %v1438 = vrot.slane %v1147, 1
        %v1439 = vrot.slane %v1148, 1
        %v1440 = vrot.slane %v1149, 1
        %v1441 = vrot.slane %v1150, 1
        %v1442 = vrot.slane %v1151, 1
        %vm1443 = vcmp.lt.s32.totalorder %v1185, 7
        %v1444 = vsel %vm1443, %v1441, %v1442
        %v1445 = vsel %vm1443, %v1440, %v1441
        %v1446 = vsel %vm1443, %v1439, %v1440
        %v1447 = vsel %vm1443, %v1438, %v1439
        %v1448 = vsel %vm1443, %v1437, %v1438
        %v1449 = vsel %vm1443, %v1436, %v1437
        %v1450 = vsel %vm1443, %v1435, %v1436
        %v1451 = vsel %vm1443, %v1434, %v1435
        %v1452 = vsel %vm1443, %v1433, %v1434
        %v1453 = vsel %vm1443, %v1432, %v1433
        %v1454 = vsel %vm1443, %v1431, %v1432
        %v1455 = vsel %vm1443, %v1430, %v1431
        %v1456 = vsel %vm1443, %v1429, %v1430
        %v1457 = vsel %vm1443, %v1428, %v1429
        %v1458 = vsel %vm1443, %v1427, %v1428
        %v1459 = vsel %vm1443, %v1426, %v1427
        %v1460 = vsel %vm1443, %v1425, %v1426
        %v1461 = vsel %vm1443, %v1424, %v1425
        %v1462 = vsel %vm1443, %v1423, %v1424
        %v1463 = vsel %vm1443, %v1422, %v1423
        %v1464 = vsel %vm1443, %v1421, %v1422
        %v1465 = vsel %vm1443, %v1420, %v1421
        %v1466 = vsel %vm1443, %v1419, %v1420
        %v1467 = vsel %vm1443, %v1418, %v1419
        %v1468 = vsel %vm1443, %v1417, %v1418
        %v1469 = vsel %vm1443, %v1416, %v1417
        %v1470 = vsel %vm1443, %v1415, %v1416
        %v1471 = vsel %vm1443, %v1414, %v1415
        %v1472 = vsel %vm1443, %v1413, %v1414
        %v1473 = vsel %vm1443, %v1412, %v1413
        %v1474 = vsel %vm1443, %v1411, %v1412
        %v1475 = vsel %vm1443, %v1442, %v1411
        %1477 = vset.pattern.permute.xlu0 0
        %1478 = vperm.xlu0 %1477, %v468
        %v1479 = vpop.permute.xlu0 %1478
        %1482 = vset.pattern.permute.xlu0 0
        %1483 = vperm.xlu0 %1482, %v469
        %v1484 = vpop.permute.xlu0 %1483
        %1487 = vset.pattern.permute.xlu0 0
        %1488 = vperm.xlu0 %1487, %v470
        %v1489 = vpop.permute.xlu0 %1488
        %1492 = vset.pattern.permute.xlu0 0
        %1493 = vperm.xlu0 %1492, %v471
        %v1494 = vpop.permute.xlu0 %1493
        %1497 = vset.pattern.permute.xlu0 0
        %1498 = vperm.xlu0 %1497, %v472
        %v1499 = vpop.permute.xlu0 %1498
        %1502 = vset.pattern.permute.xlu0 0
        %1503 = vperm.xlu0 %1502, %v473
        %v1504 = vpop.permute.xlu0 %1503
        %1507 = vset.pattern.permute.xlu0 0
        %1508 = vperm.xlu0 %1507, %v474
        %v1509 = vpop.permute.xlu0 %1508
        %1512 = vset.pattern.permute.xlu0 0
        %1513 = vperm.xlu0 %1512, %v475
        %v1514 = vpop.permute.xlu0 %1513
        %1517 = vset.pattern.permute.xlu0 0
        %1518 = vperm.xlu0 %1517, %v476
        %v1519 = vpop.permute.xlu0 %1518
        %1522 = vset.pattern.permute.xlu0 0
        %1523 = vperm.xlu0 %1522, %v477
        %v1524 = vpop.permute.xlu0 %1523
        %1527 = vset.pattern.permute.xlu0 0
        %1528 = vperm.xlu0 %1527, %v478
        %v1529 = vpop.permute.xlu0 %1528
        %1532 = vset.pattern.permute.xlu0 0
        %1533 = vperm.xlu0 %1532, %v479
        %v1534 = vpop.permute.xlu0 %1533
        %1537 = vset.pattern.permute.xlu0 0
        %1538 = vperm.xlu0 %1537, %v480
        %v1539 = vpop.permute.xlu0 %1538
        %1542 = vset.pattern.permute.xlu0 0
        %1543 = vperm.xlu0 %1542, %v481
        %v1544 = vpop.permute.xlu0 %1543
        %1547 = vset.pattern.permute.xlu0 0
        %1548 = vperm.xlu0 %1547, %v482
        %v1549 = vpop.permute.xlu0 %1548
        %1552 = vset.pattern.permute.xlu0 0
        %1553 = vperm.xlu0 %1552, %v483
        %v1554 = vpop.permute.xlu0 %1553
        %1557 = vset.pattern.permute.xlu0 0
        %1558 = vperm.xlu0 %1557, %v484
        %v1559 = vpop.permute.xlu0 %1558
        %1562 = vset.pattern.permute.xlu0 0
        %1563 = vperm.xlu0 %1562, %v485
        %v1564 = vpop.permute.xlu0 %1563
        %1567 = vset.pattern.permute.xlu0 0
        %1568 = vperm.xlu0 %1567, %v486
        %v1569 = vpop.permute.xlu0 %1568
        %1572 = vset.pattern.permute.xlu0 0
        %1573 = vperm.xlu0 %1572, %v487
        %v1574 = vpop.permute.xlu0 %1573
        %1577 = vset.pattern.permute.xlu0 0
        %1578 = vperm.xlu0 %1577, %v488
        %v1579 = vpop.permute.xlu0 %1578
        %1582 = vset.pattern.permute.xlu0 0
        %1583 = vperm.xlu0 %1582, %v489
        %v1584 = vpop.permute.xlu0 %1583
        %1587 = vset.pattern.permute.xlu0 0
        %1588 = vperm.xlu0 %1587, %v490
        %v1589 = vpop.permute.xlu0 %1588
        %1592 = vset.pattern.permute.xlu0 0
        %1593 = vperm.xlu0 %1592, %v491
        %v1594 = vpop.permute.xlu0 %1593
        %1597 = vset.pattern.permute.xlu0 0
        %1598 = vperm.xlu0 %1597, %v492
        %v1599 = vpop.permute.xlu0 %1598
        %1602 = vset.pattern.permute.xlu0 0
        %1603 = vperm.xlu0 %1602, %v493
        %v1604 = vpop.permute.xlu0 %1603
        %1607 = vset.pattern.permute.xlu0 0
        %1608 = vperm.xlu0 %1607, %v494
        %v1609 = vpop.permute.xlu0 %1608
        %1612 = vset.pattern.permute.xlu0 0
        %1613 = vperm.xlu0 %1612, %v495
        %v1614 = vpop.permute.xlu0 %1613
        %1617 = vset.pattern.permute.xlu0 0
        %1618 = vperm.xlu0 %1617, %v496
        %v1619 = vpop.permute.xlu0 %1618
        %1622 = vset.pattern.permute.xlu0 0
        %1623 = vperm.xlu0 %1622, %v497
        %v1624 = vpop.permute.xlu0 %1623
        %1627 = vset.pattern.permute.xlu0 0
        %1628 = vperm.xlu0 %1627, %v498
        %v1629 = vpop.permute.xlu0 %1628
        %1632 = vset.pattern.permute.xlu0 0
        %1633 = vperm.xlu0 %1632, %v499
        %v1634 = vpop.permute.xlu0 %1633
        %v1636 = vmul.f32 %v1474, %v1479
        %v1637 = vmul.f32 %v1473, %v1484
        %v1638 = vmul.f32 %v1472, %v1489
        %v1639 = vmul.f32 %v1471, %v1494
        %v1640 = vmul.f32 %v1470, %v1499
        %v1641 = vmul.f32 %v1469, %v1504
        %v1642 = vmul.f32 %v1468, %v1509
        %v1643 = vmul.f32 %v1467, %v1514
        %v1644 = vmul.f32 %v1466, %v1519
        %v1645 = vmul.f32 %v1465, %v1524
        %v1646 = vmul.f32 %v1464, %v1529
        %v1647 = vmul.f32 %v1463, %v1534
        %v1648 = vmul.f32 %v1462, %v1539
        %v1649 = vmul.f32 %v1461, %v1544
        %v1650 = vmul.f32 %v1460, %v1549
        %v1651 = vmul.f32 %v1459, %v1554
        %v1652 = vmul.f32 %v1458, %v1559
        %v1653 = vmul.f32 %v1457, %v1564
        %v1654 = vmul.f32 %v1456, %v1569
        %v1655 = vmul.f32 %v1455, %v1574
        %v1656 = vmul.f32 %v1454, %v1579
        %v1657 = vmul.f32 %v1453, %v1584
        %v1658 = vmul.f32 %v1452, %v1589
        %v1659 = vmul.f32 %v1451, %v1594
        %v1660 = vmul.f32 %v1450, %v1599
        %v1661 = vmul.f32 %v1449, %v1604
        %v1662 = vmul.f32 %v1448, %v1609
        %v1663 = vmul.f32 %v1447, %v1614
        %v1664 = vmul.f32 %v1446, %v1619
        %v1665 = vmul.f32 %v1445, %v1624
        %v1666 = vmul.f32 %v1444, %v1629
        %v1667 = vmul.f32 %v1475, %v1634
        %1700 = vrot.lane.b32.xlu0 %v1120, 8
        %v1701 = vpop.permute.xlu0 %1700
        %1702 = vrot.lane.b32.xlu0 %v1121, 8
        %v1703 = vpop.permute.xlu0 %1702
        %1704 = vrot.lane.b32.xlu0 %v1122, 8
        %v1705 = vpop.permute.xlu0 %1704
        %1706 = vrot.lane.b32.xlu0 %v1123, 8
        %v1707 = vpop.permute.xlu0 %1706
        %1708 = vrot.lane.b32.xlu0 %v1124, 8
        %v1709 = vpop.permute.xlu0 %1708
        %1710 = vrot.lane.b32.xlu0 %v1125, 8
        %v1711 = vpop.permute.xlu0 %1710
        %1712 = vrot.lane.b32.xlu0 %v1126, 8
        %v1713 = vpop.permute.xlu0 %1712
        %1714 = vrot.lane.b32.xlu0 %v1127, 8
        %v1715 = vpop.permute.xlu0 %1714
        %1716 = vrot.lane.b32.xlu0 %v1128, 8
        %v1717 = vpop.permute.xlu0 %1716
        %1718 = vrot.lane.b32.xlu0 %v1129, 8
        %v1719 = vpop.permute.xlu0 %1718
        %1720 = vrot.lane.b32.xlu0 %v1130, 8
        %v1721 = vpop.permute.xlu0 %1720
        %1722 = vrot.lane.b32.xlu0 %v1131, 8
        %v1723 = vpop.permute.xlu0 %1722
        %1724 = vrot.lane.b32.xlu0 %v1132, 8
        %v1725 = vpop.permute.xlu0 %1724
        %1726 = vrot.lane.b32.xlu0 %v1133, 8
        %v1727 = vpop.permute.xlu0 %1726
        %1728 = vrot.lane.b32.xlu0 %v1134, 8
        %v1729 = vpop.permute.xlu0 %1728
        %1730 = vrot.lane.b32.xlu0 %v1135, 8
        %v1731 = vpop.permute.xlu0 %1730
        %1732 = vrot.lane.b32.xlu0 %v1136, 8
        %v1733 = vpop.permute.xlu0 %1732
        %1734 = vrot.lane.b32.xlu0 %v1137, 8
        %v1735 = vpop.permute.xlu0 %1734
        %1736 = vrot.lane.b32.xlu0 %v1138, 8
        %v1737 = vpop.permute.xlu0 %1736
        %1738 = vrot.lane.b32.xlu0 %v1139, 8
        %v1739 = vpop.permute.xlu0 %1738
        %1740 = vrot.lane.b32.xlu0 %v1140, 8
        %v1741 = vpop.permute.xlu0 %1740
        %1742 = vrot.lane.b32.xlu0 %v1141, 8
        %v1743 = vpop.permute.xlu0 %1742
        %1744 = vrot.lane.b32.xlu0 %v1142, 8
        %v1745 = vpop.permute.xlu0 %1744
        %1746 = vrot.lane.b32.xlu0 %v1143, 8
        %v1747 = vpop.permute.xlu0 %1746
        %1748 = vrot.lane.b32.xlu0 %v1144, 8
        %v1749 = vpop.permute.xlu0 %1748
        %1750 = vrot.lane.b32.xlu0 %v1145, 8
        %v1751 = vpop.permute.xlu0 %1750
        %1752 = vrot.lane.b32.xlu0 %v1146, 8
        %v1753 = vpop.permute.xlu0 %1752
        %1754 = vrot.lane.b32.xlu0 %v1147, 8
        %v1755 = vpop.permute.xlu0 %1754
        %1756 = vrot.lane.b32.xlu0 %v1148, 8
        %v1757 = vpop.permute.xlu0 %1756
        %1758 = vrot.lane.b32.xlu0 %v1149, 8
        %v1759 = vpop.permute.xlu0 %1758
        %1760 = vrot.lane.b32.xlu0 %v1150, 8
        %v1761 = vpop.permute.xlu0 %1760
        %1762 = vrot.lane.b32.xlu0 %v1151, 8
        %v1763 = vpop.permute.xlu0 %1762
        %1828 = vrot.lane.b32.xlu0 %v1636, 16
        %v1829 = vpop.permute.xlu0 %1828
        %1830 = vrot.lane.b32.xlu0 %v1637, 16
        %v1831 = vpop.permute.xlu0 %1830
        %1832 = vrot.lane.b32.xlu0 %v1638, 16
        %v1833 = vpop.permute.xlu0 %1832
        %1834 = vrot.lane.b32.xlu0 %v1639, 16
        %v1835 = vpop.permute.xlu0 %1834
        %1836 = vrot.lane.b32.xlu0 %v1640, 16
        %v1837 = vpop.permute.xlu0 %1836
        %1838 = vrot.lane.b32.xlu0 %v1641, 16
        %v1839 = vpop.permute.xlu0 %1838
        %1840 = vrot.lane.b32.xlu0 %v1642, 16
        %v1841 = vpop.permute.xlu0 %1840
        %1842 = vrot.lane.b32.xlu0 %v1643, 16
        %v1843 = vpop.permute.xlu0 %1842
        %1844 = vrot.lane.b32.xlu0 %v1644, 16
        %v1845 = vpop.permute.xlu0 %1844
        %1846 = vrot.lane.b32.xlu0 %v1645, 16
        %v1847 = vpop.permute.xlu0 %1846
        %1848 = vrot.lane.b32.xlu0 %v1646, 16
        %v1849 = vpop.permute.xlu0 %1848
        %1850 = vrot.lane.b32.xlu0 %v1647, 16
        %v1851 = vpop.permute.xlu0 %1850
        %1852 = vrot.lane.b32.xlu0 %v1648, 16
        %v1853 = vpop.permute.xlu0 %1852
        %1854 = vrot.lane.b32.xlu0 %v1649, 16
        %v1855 = vpop.permute.xlu0 %1854
        %1856 = vrot.lane.b32.xlu0 %v1650, 16
        %v1857 = vpop.permute.xlu0 %1856
        %1858 = vrot.lane.b32.xlu0 %v1651, 16
        %v1859 = vpop.permute.xlu0 %1858
        %1860 = vrot.lane.b32.xlu0 %v1652, 16
        %v1861 = vpop.permute.xlu0 %1860
        %1862 = vrot.lane.b32.xlu0 %v1653, 16
        %v1863 = vpop.permute.xlu0 %1862
        %1864 = vrot.lane.b32.xlu0 %v1654, 16
        %v1865 = vpop.permute.xlu0 %1864
        %1866 = vrot.lane.b32.xlu0 %v1655, 16
        %v1867 = vpop.permute.xlu0 %1866
        %1868 = vrot.lane.b32.xlu0 %v1656, 16
        %v1869 = vpop.permute.xlu0 %1868
        %1870 = vrot.lane.b32.xlu0 %v1657, 16
        %v1871 = vpop.permute.xlu0 %1870
        %1872 = vrot.lane.b32.xlu0 %v1658, 16
        %v1873 = vpop.permute.xlu0 %1872
        %1874 = vrot.lane.b32.xlu0 %v1659, 16
        %v1875 = vpop.permute.xlu0 %1874
        %1876 = vrot.lane.b32.xlu0 %v1660, 16
        %v1877 = vpop.permute.xlu0 %1876
        %1878 = vrot.lane.b32.xlu0 %v1661, 16
        %v1879 = vpop.permute.xlu0 %1878
        %1880 = vrot.lane.b32.xlu0 %v1662, 16
        %v1881 = vpop.permute.xlu0 %1880
        %1882 = vrot.lane.b32.xlu0 %v1663, 16
        %v1883 = vpop.permute.xlu0 %1882
        %1884 = vrot.lane.b32.xlu0 %v1664, 16
        %v1885 = vpop.permute.xlu0 %1884
        %1886 = vrot.lane.b32.xlu0 %v1665, 16
        %v1887 = vpop.permute.xlu0 %1886
        %1888 = vrot.lane.b32.xlu0 %v1666, 16
        %v1889 = vpop.permute.xlu0 %1888
        %1890 = vrot.lane.b32.xlu0 %v1667, 16
        %v1891 = vpop.permute.xlu0 %1890
        %v1924 = vsel %vm726, %v1379, %v1701
        %v1925 = vsel %vm726, %v1380, %v1703
        %v1926 = vsel %vm726, %v1381, %v1705
        %v1927 = vsel %vm726, %v1382, %v1707
        %v1928 = vsel %vm726, %v1383, %v1709
        %v1929 = vsel %vm726, %v1384, %v1711
        %v1930 = vsel %vm726, %v1385, %v1713
        %v1931 = vsel %vm726, %v1386, %v1715
        %v1932 = vsel %vm726, %v1387, %v1717
        %v1933 = vsel %vm726, %v1388, %v1719
        %v1934 = vsel %vm726, %v1389, %v1721
        %v1935 = vsel %vm726, %v1390, %v1723
        %v1936 = vsel %vm726, %v1391, %v1725
        %v1937 = vsel %vm726, %v1392, %v1727
        %v1938 = vsel %vm726, %v1393, %v1729
        %v1939 = vsel %vm726, %v1394, %v1731
        %v1940 = vsel %vm726, %v1395, %v1733
        %v1941 = vsel %vm726, %v1396, %v1735
        %v1942 = vsel %vm726, %v1397, %v1737
        %v1943 = vsel %vm726, %v1398, %v1739
        %v1944 = vsel %vm726, %v1399, %v1741
        %v1945 = vsel %vm726, %v1400, %v1743
        %v1946 = vsel %vm726, %v1401, %v1745
        %v1947 = vsel %vm726, %v1402, %v1747
        %v1948 = vsel %vm726, %v1403, %v1749
        %v1949 = vsel %vm726, %v1404, %v1751
        %v1950 = vsel %vm726, %v1405, %v1753
        %v1951 = vsel %vm726, %v1406, %v1755
        %v1952 = vsel %vm726, %v1407, %v1757
        %v1953 = vsel %vm726, %v1408, %v1759
        %v1954 = vsel %vm726, %v1409, %v1761
        %v1955 = vsel %vm726, %v1410, %v1763
        %v1956 = vsel %vm759, %v1924, %v1829
        %v1957 = vsel %vm759, %v1925, %v1831
        %v1958 = vsel %vm759, %v1926, %v1833
        %v1959 = vsel %vm759, %v1927, %v1835
        %v1960 = vsel %vm759, %v1928, %v1837
        %v1961 = vsel %vm759, %v1929, %v1839
        %v1962 = vsel %vm759, %v1930, %v1841
        %v1963 = vsel %vm759, %v1931, %v1843
        %v1964 = vsel %vm759, %v1932, %v1845
        %v1965 = vsel %vm759, %v1933, %v1847
        %v1966 = vsel %vm759, %v1934, %v1849
        %v1967 = vsel %vm759, %v1935, %v1851
        %v1968 = vsel %vm759, %v1936, %v1853
        %v1969 = vsel %vm759, %v1937, %v1855
        %v1970 = vsel %vm759, %v1938, %v1857
        %v1971 = vsel %vm759, %v1939, %v1859
        %v1972 = vsel %vm759, %v1940, %v1861
        %v1973 = vsel %vm759, %v1941, %v1863
        %v1974 = vsel %vm759, %v1942, %v1865
        %v1975 = vsel %vm759, %v1943, %v1867
        %v1976 = vsel %vm759, %v1944, %v1869
        %v1977 = vsel %vm759, %v1945, %v1871
        %v1978 = vsel %vm759, %v1946, %v1873
        %v1979 = vsel %vm759, %v1947, %v1875
        %v1980 = vsel %vm759, %v1948, %v1877
        %v1981 = vsel %vm759, %v1949, %v1879
        %v1982 = vsel %vm759, %v1950, %v1881
        %v1983 = vsel %vm759, %v1951, %v1883
        %v1984 = vsel %vm759, %v1952, %v1885
        %v1985 = vsel %vm759, %v1953, %v1887
        %v1986 = vsel %vm759, %v1954, %v1889
        %v1987 = vsel %vm759, %v1955, %v1891
        %v1989 = vsel %vm798, %v1956, 0
        %v1992 = vsel %vm798, %v1957, 0
        %v1995 = vsel %vm798, %v1958, 0
        %v1998 = vsel %vm798, %v1959, 0
        %v2001 = vsel %vm798, %v1960, 0
        %v2004 = vsel %vm798, %v1961, 0
        %v2007 = vsel %vm798, %v1962, 0
        %v2010 = vsel %vm798, %v1963, 0
        %v2013 = vsel %vm798, %v1964, 0
        %v2016 = vsel %vm798, %v1965, 0
        %v2019 = vsel %vm798, %v1966, 0
        %v2022 = vsel %vm798, %v1967, 0
        %v2025 = vsel %vm798, %v1968, 0
        %v2028 = vsel %vm798, %v1969, 0
        %v2031 = vsel %vm798, %v1970, 0
        %v2034 = vsel %vm798, %v1971, 0
        %v2037 = vsel %vm798, %v1972, 0
        %v2040 = vsel %vm798, %v1973, 0
        %v2043 = vsel %vm798, %v1974, 0
        %v2046 = vsel %vm798, %v1975, 0
        %v2049 = vsel %vm798, %v1976, 0
        %v2052 = vsel %vm798, %v1977, 0
        %v2055 = vsel %vm798, %v1978, 0
        %v2058 = vsel %vm798, %v1979, 0
        %v2061 = vsel %vm798, %v1980, 0
        %v2064 = vsel %vm798, %v1981, 0
        %v2067 = vsel %vm798, %v1982, 0
        %v2070 = vsel %vm798, %v1983, 0
        %v2073 = vsel %vm798, %v1984, 0
        %v2076 = vsel %vm798, %v1985, 0
        %v2079 = vsel %vm798, %v1986, 0
        %v2082 = vsel %vm798, %v1987, 0
        %2084 = vmatprep.subr.mxu0 0.0
        %2085 = vmatpush1.msra.mxu0 %v433
        %2086 = vmatprep.subr.mxu0 0.0
        %2087 = vmatpush1.msra.mxu0 %v434
        %2088 = vmatprep.subr.mxu0 0.0
        %2089 = vmatpush1.msra.mxu0 %v435
        %2090 = vmatprep.subr.mxu0 0.0
        %2091 = vmatpush1.msra.mxu0 0.0
        %2092 = vmatprep.subr.mxu0 0.0
        %2093 = vmatpush1.msra.mxu0 0.0
        %2094 = vmatprep.subr.mxu0 0.0
        %2095 = vmatpush1.msra.mxu0 0.0
        %2096 = vmatprep.subr.mxu0 0.0
        %2097 = vmatpush1.msra.mxu0 0.0
        %2098 = vmatprep.subr.mxu0 0.0
        %2099 = vmatpush1.msra.mxu0 0.0
        %2100 = vmatprep.subr.mxu0 0.0
        %2101 = vmatpush1.msra.mxu0 0.0
        %2102 = vmatprep.subr.mxu0 0.0
        %2103 = vmatpush1.msra.mxu0 0.0
        %2104 = vmatprep.subr.mxu0 0.0
        %2105 = vmatpush1.msra.mxu0 0.0
        %2106 = vmatprep.subr.mxu0 0.0
        %2107 = vmatpush1.msra.mxu0 0.0
        %2108 = vmatprep.subr.mxu0 0.0
        %2109 = vmatpush1.msra.mxu0 0.0
        %2110 = vmatprep.subr.mxu0 0.0
        %2111 = vmatpush1.msra.mxu0 0.0
        %2112 = vmatprep.subr.mxu0 0.0
        %2113 = vmatpush1.msra.mxu0 0.0
        %2114 = vmatprep.subr.mxu0 0.0
        %2115 = vmatpush1.msra.mxu0 0.0
        %2116 = vmatprep.subr.mxu0 0.0
        %2117 = vmatpush1.msra.mxu0 0.0
        %2118 = vmatprep.subr.mxu0 0.0
        %2119 = vmatpush1.msra.mxu0 0.0
        %2120 = vmatprep.subr.mxu0 0.0
        %2121 = vmatpush1.msra.mxu0 0.0
        %2122 = vmatprep.subr.mxu0 0.0
        %2123 = vmatpush1.msra.mxu0 0.0
        %2124 = vmatprep.subr.mxu0 0.0
        %2125 = vmatpush1.msra.mxu0 0.0
        %2126 = vmatprep.subr.mxu0 0.0
        %2127 = vmatpush1.msra.mxu0 0.0
        %2128 = vmatprep.subr.mxu0 0.0
        %2129 = vmatpush1.msra.mxu0 0.0
        %2130 = vmatprep.subr.mxu0 0.0
        %2131 = vmatpush1.msra.mxu0 0.0
        %2132 = vmatprep.subr.mxu0 0.0
        %2133 = vmatpush1.msra.mxu0 0.0
        %2134 = vmatprep.subr.mxu0 0.0
        %2135 = vmatpush1.msra.mxu0 0.0
        %2136 = vmatprep.subr.mxu0 0.0
        %2137 = vmatpush1.msra.mxu0 0.0
        %2138 = vmatprep.subr.mxu0 0.0
        %2139 = vmatpush1.msra.mxu0 0.0
        %2140 = vmatprep.subr.mxu0 0.0
        %2141 = vmatpush1.msra.mxu0 0.0
        %2142 = vmatprep.subr.mxu0 0.0
        %2143 = vmatpush1.msra.mxu0 0.0
        %2144 = vmatprep.subr.mxu0 0.0
        %2145 = vmatpush1.msra.mxu0 0.0
        %2146 = vmatprep.subr.mxu0 0.0
        %2147 = vmatpush1.msra.mxu0 0.0
        %2148 = vmatprep.mubr.f32.mxu0 0.0
        %2149 = vmatmul.mubr.f32.gmra.mrb[0].mxu0 %v1989
        %v2150 = vpop.f32.mrb[0].mxu0
        %v2151 = vadd.f32 0.0, %v2150
        %v2152 = vpop.f32.mrb[0].mxu0
        %2153 = vmatprep.mubr.f32.mxu0 0.0
        %2154 = vmatmul.mubr.f32.gmra.mrb[0].mxu0 %v1992
        %v2155 = vpop.f32.mrb[0].mxu0
        %v2156 = vadd.f32 0.0, %v2155
        %v2157 = vpop.f32.mrb[0].mxu0
        %2158 = vmatprep.mubr.f32.mxu0 0.0
        %2159 = vmatmul.mubr.f32.gmra.mrb[0].mxu0 %v1995
        %v2160 = vpop.f32.mrb[0].mxu0
        %v2161 = vadd.f32 0.0, %v2160
        %v2162 = vpop.f32.mrb[0].mxu0
        %2163 = vmatprep.mubr.f32.mxu0 0.0
        %2164 = vmatmul.mubr.f32.gmra.mrb[0].mxu0 %v1998
        %v2165 = vpop.f32.mrb[0].mxu0
        %v2166 = vadd.f32 0.0, %v2165
        %v2167 = vpop.f32.mrb[0].mxu0
        %2168 = vmatprep.mubr.f32.mxu0 0.0
        %2169 = vmatmul.mubr.f32.gmra.mrb[0].mxu0 %v2001
        %v2170 = vpop.f32.mrb[0].mxu0
        %v2171 = vadd.f32 0.0, %v2170
        %v2172 = vpop.f32.mrb[0].mxu0
        %2173 = vmatprep.mubr.f32.mxu0 0.0
        %2174 = vmatmul.mubr.f32.gmra.mrb[0].mxu0 %v2004
        %v2175 = vpop.f32.mrb[0].mxu0
        %v2176 = vadd.f32 0.0, %v2175
        %v2177 = vpop.f32.mrb[0].mxu0
        %2178 = vmatprep.mubr.f32.mxu0 0.0
        %2179 = vmatmul.mubr.f32.gmra.mrb[0].mxu0 %v2007
        %v2180 = vpop.f32.mrb[0].mxu0
        %v2181 = vadd.f32 0.0, %v2180
        %v2182 = vpop.f32.mrb[0].mxu0
        %2183 = vmatprep.mubr.f32.mxu0 0.0
        %2184 = vmatmul.mubr.f32.gmra.mrb[0].mxu0 %v2010
        %v2185 = vpop.f32.mrb[0].mxu0
        %v2186 = vadd.f32 0.0, %v2185
        %v2187 = vpop.f32.mrb[0].mxu0
        %2188 = vmatprep.mubr.f32.mxu0 0.0
        %2189 = vmatmul.mubr.f32.gmra.mrb[0].mxu0 %v2013
        %v2190 = vpop.f32.mrb[0].mxu0
        %v2191 = vadd.f32 0.0, %v2190
        %v2192 = vpop.f32.mrb[0].mxu0
        %2193 = vmatprep.mubr.f32.mxu0 0.0
        %2194 = vmatmul.mubr.f32.gmra.mrb[0].mxu0 %v2016
        %v2195 = vpop.f32.mrb[0].mxu0
        %v2196 = vadd.f32 0.0, %v2195
        %v2197 = vpop.f32.mrb[0].mxu0
        %2198 = vmatprep.mubr.f32.mxu0 0.0
        %2199 = vmatmul.mubr.f32.gmra.mrb[0].mxu0 %v2019
        %v2200 = vpop.f32.mrb[0].mxu0
        %v2201 = vadd.f32 0.0, %v2200
        %v2202 = vpop.f32.mrb[0].mxu0
        %2203 = vmatprep.mubr.f32.mxu0 0.0
        %2204 = vmatmul.mubr.f32.gmra.mrb[0].mxu0 %v2022
        %v2205 = vpop.f32.mrb[0].mxu0
        %v2206 = vadd.f32 0.0, %v2205
        %v2207 = vpop.f32.mrb[0].mxu0
        %2208 = vmatprep.mubr.f32.mxu0 0.0
        %2209 = vmatmul.mubr.f32.gmra.mrb[0].mxu0 %v2025
        %v2210 = vpop.f32.mrb[0].mxu0
        %v2211 = vadd.f32 0.0, %v2210
        %v2212 = vpop.f32.mrb[0].mxu0
        %2213 = vmatprep.mubr.f32.mxu0 0.0
        %2214 = vmatmul.mubr.f32.gmra.mrb[0].mxu0 %v2028
        %v2215 = vpop.f32.mrb[0].mxu0
        %v2216 = vadd.f32 0.0, %v2215
        %v2217 = vpop.f32.mrb[0].mxu0
        %2218 = vmatprep.mubr.f32.mxu0 0.0
        %2219 = vmatmul.mubr.f32.gmra.mrb[0].mxu0 %v2031
        %v2220 = vpop.f32.mrb[0].mxu0
        %v2221 = vadd.f32 0.0, %v2220
        %v2222 = vpop.f32.mrb[0].mxu0
        %2223 = vmatprep.mubr.f32.mxu0 0.0
        %2224 = vmatmul.mubr.f32.gmra.mrb[0].mxu0 %v2034
        %v2225 = vpop.f32.mrb[0].mxu0
        %v2226 = vadd.f32 0.0, %v2225
        %v2227 = vpop.f32.mrb[0].mxu0
        %2228 = vmatprep.mubr.f32.mxu0 0.0
        %2229 = vmatmul.mubr.f32.gmra.mrb[0].mxu0 %v2037
        %v2230 = vpop.f32.mrb[0].mxu0
        %v2231 = vadd.f32 0.0, %v2230
        %v2232 = vpop.f32.mrb[0].mxu0
        %2233 = vmatprep.mubr.f32.mxu0 0.0
        %2234 = vmatmul.mubr.f32.gmra.mrb[0].mxu0 %v2040
        %v2235 = vpop.f32.mrb[0].mxu0
        %v2236 = vadd.f32 0.0, %v2235
        %v2237 = vpop.f32.mrb[0].mxu0
        %2238 = vmatprep.mubr.f32.mxu0 0.0
        %2239 = vmatmul.mubr.f32.gmra.mrb[0].mxu0 %v2043
        %v2240 = vpop.f32.mrb[0].mxu0
        %v2241 = vadd.f32 0.0, %v2240
        %v2242 = vpop.f32.mrb[0].mxu0
        %2243 = vmatprep.mubr.f32.mxu0 0.0
        %2244 = vmatmul.mubr.f32.gmra.mrb[0].mxu0 %v2046
        %v2245 = vpop.f32.mrb[0].mxu0
        %v2246 = vadd.f32 0.0, %v2245
        %v2247 = vpop.f32.mrb[0].mxu0
        %2248 = vmatprep.mubr.f32.mxu0 0.0
        %2249 = vmatmul.mubr.f32.gmra.mrb[0].mxu0 %v2049
        %v2250 = vpop.f32.mrb[0].mxu0
        %v2251 = vadd.f32 0.0, %v2250
        %v2252 = vpop.f32.mrb[0].mxu0
        %2253 = vmatprep.mubr.f32.mxu0 0.0
        %2254 = vmatmul.mubr.f32.gmra.mrb[0].mxu0 %v2052
        %v2255 = vpop.f32.mrb[0].mxu0
        %v2256 = vadd.f32 0.0, %v2255
        %v2257 = vpop.f32.mrb[0].mxu0
        %2258 = vmatprep.mubr.f32.mxu0 0.0
        %2259 = vmatmul.mubr.f32.gmra.mrb[0].mxu0 %v2055
        %v2260 = vpop.f32.mrb[0].mxu0
        %v2261 = vadd.f32 0.0, %v2260
        %v2262 = vpop.f32.mrb[0].mxu0
        %2263 = vmatprep.mubr.f32.mxu0 0.0
        %2264 = vmatmul.mubr.f32.gmra.mrb[0].mxu0 %v2058
        %v2265 = vpop.f32.mrb[0].mxu0
        %v2266 = vadd.f32 0.0, %v2265
        %v2267 = vpop.f32.mrb[0].mxu0
        %2268 = vmatprep.mubr.f32.mxu0 0.0
        %2269 = vmatmul.mubr.f32.gmra.mrb[0].mxu0 %v2061
        %v2270 = vpop.f32.mrb[0].mxu0
        %v2271 = vadd.f32 0.0, %v2270
        %v2272 = vpop.f32.mrb[0].mxu0
        %2273 = vmatprep.mubr.f32.mxu0 0.0
        %2274 = vmatmul.mubr.f32.gmra.mrb[0].mxu0 %v2064
        %v2275 = vpop.f32.mrb[0].mxu0
        %v2276 = vadd.f32 0.0, %v2275
        %v2277 = vpop.f32.mrb[0].mxu0
        %2278 = vmatprep.mubr.f32.mxu0 0.0
        %2279 = vmatmul.mubr.f32.gmra.mrb[0].mxu0 %v2067
        %v2280 = vpop.f32.mrb[0].mxu0
        %v2281 = vadd.f32 0.0, %v2280
        %v2282 = vpop.f32.mrb[0].mxu0
        %2283 = vmatprep.mubr.f32.mxu0 0.0
        %2284 = vmatmul.mubr.f32.gmra.mrb[0].mxu0 %v2070
        %v2285 = vpop.f32.mrb[0].mxu0
        %v2286 = vadd.f32 0.0, %v2285
        %v2287 = vpop.f32.mrb[0].mxu0
        %2288 = vmatprep.mubr.f32.mxu0 0.0
        %2289 = vmatmul.mubr.f32.gmra.mrb[0].mxu0 %v2073
        %v2290 = vpop.f32.mrb[0].mxu0
        %v2291 = vadd.f32 0.0, %v2290
        %v2292 = vpop.f32.mrb[0].mxu0
        %2293 = vmatprep.mubr.f32.mxu0 0.0
        %2294 = vmatmul.mubr.f32.gmra.mrb[0].mxu0 %v2076
        %v2295 = vpop.f32.mrb[0].mxu0
        %v2296 = vadd.f32 0.0, %v2295
        %v2297 = vpop.f32.mrb[0].mxu0
        %2298 = vmatprep.mubr.f32.mxu0 0.0
        %2299 = vmatmul.mubr.f32.gmra.mrb[0].mxu0 %v2079
        %v2300 = vpop.f32.mrb[0].mxu0
        %v2301 = vadd.f32 0.0, %v2300
        %v2302 = vpop.f32.mrb[0].mxu0
        %2303 = vmatprep.mubr.f32.mxu0 0.0
        %2304 = vmatmul.mubr.f32.gmra.mrb[0].mxu0 %v2082
        %v2305 = vpop.f32.mrb[0].mxu0
        %v2306 = vadd.f32 0.0, %v2305
        %v2307 = vpop.f32.mrb[0].mxu0
        %2308 = vdwg.mxu0
        %2309 = vst.msk [vmem:[%s383] sm:$0xff] %vm726, %v2151
        %2310 = vst.msk [vmem:[%s383 + $0x8] sm:$0xff] %vm726, %v2156
        %2311 = vst.msk [vmem:[%s383 + $0x10] sm:$0xff] %vm726, %v2161
        %2312 = vst.msk [vmem:[%s383 + $0x18] sm:$0xff] %vm726, %v2166
        %2313 = vst.msk [vmem:[%s383 + $0x20] sm:$0xff] %vm726, %v2171
        %2314 = vst.msk [vmem:[%s383 + $0x28] sm:$0xff] %vm726, %v2176
        %2315 = vst.msk [vmem:[%s383 + $0x30] sm:$0xff] %vm726, %v2181
        %2316 = vst.msk [vmem:[%s383 + $0x38] sm:$0xff] %vm726, %v2186
        %2317 = vst.msk [vmem:[%s383 + $0x40] sm:$0xff] %vm726, %v2191
        %2318 = vst.msk [vmem:[%s383 + $0x48] sm:$0xff] %vm726, %v2196
        %2319 = vst.msk [vmem:[%s383 + $0x50] sm:$0xff] %vm726, %v2201
        %2320 = vst.msk [vmem:[%s383 + $0x58] sm:$0xff] %vm726, %v2206
        %2321 = vst.msk [vmem:[%s383 + $0x60] sm:$0xff] %vm726, %v2211
        %2322 = vst.msk [vmem:[%s383 + $0x68] sm:$0xff] %vm726, %v2216
        %2323 = vst.msk [vmem:[%s383 + $0x70] sm:$0xff] %vm726, %v2221
        %2324 = vst.msk [vmem:[%s383 + $0x78] sm:$0xff] %vm726, %v2226
        %2325 = vst.msk [vmem:[%s383 + $0x80] sm:$0xff] %vm726, %v2231
        %2326 = vst.msk [vmem:[%s383 + $0x88] sm:$0xff] %vm726, %v2236
        %2327 = vst.msk [vmem:[%s383 + $0x90] sm:$0xff] %vm726, %v2241
        %2328 = vst.msk [vmem:[%s383 + $0x98] sm:$0xff] %vm726, %v2246
        %2329 = vst.msk [vmem:[%s383 + $0xa0] sm:$0xff] %vm726, %v2251
        %2330 = vst.msk [vmem:[%s383 + $0xa8] sm:$0xff] %vm726, %v2256
        %2331 = vst.msk [vmem:[%s383 + $0xb0] sm:$0xff] %vm726, %v2261
        %2332 = vst.msk [vmem:[%s383 + $0xb8] sm:$0xff] %vm726, %v2266
        %2333 = vst.msk [vmem:[%s383 + $0xc0] sm:$0xff] %vm726, %v2271
        %2334 = vst.msk [vmem:[%s383 + $0xc8] sm:$0xff] %vm726, %v2276
        %2335 = vst.msk [vmem:[%s383 + $0xd0] sm:$0xff] %vm726, %v2281
        %2336 = vst.msk [vmem:[%s383 + $0xd8] sm:$0xff] %vm726, %v2286
        %2337 = vst.msk [vmem:[%s383 + $0xe0] sm:$0xff] %vm726, %v2291
        %2338 = vst.msk [vmem:[%s383 + $0xe8] sm:$0xff] %vm726, %v2296
        %2339 = vst.msk [vmem:[%s383 + $0xf0] sm:$0xff] %vm726, %v2301
        %2340 = vst.msk [vmem:[%s383 + $0xf8] sm:$0xff] %vm726, %v2306
        %v2341 = vsel %vm726, %v2151, 0.0
        %v2342 = vsel %vm726, %v2156, 0.0
        %v2343 = vadd.f32 %v2341, %v2342
        %v2344 = vsel %vm726, %v2161, 0.0
        %v2345 = vadd.f32 %v2343, %v2344
        %v2346 = vsel %vm726, %v2166, 0.0
        %v2347 = vadd.f32 %v2345, %v2346
        %v2348 = vsel %vm726, %v2171, 0.0
        %v2349 = vadd.f32 %v2347, %v2348
        %v2350 = vsel %vm726, %v2176, 0.0
        %v2351 = vadd.f32 %v2349, %v2350
        %v2352 = vsel %vm726, %v2181, 0.0
        %v2353 = vadd.f32 %v2351, %v2352
        %v2354 = vsel %vm726, %v2186, 0.0
        %v2355 = vadd.f32 %v2353, %v2354
        %v2356 = vsel %vm726, %v2191, 0.0
        %v2357 = vadd.f32 %v2355, %v2356
        %v2358 = vsel %vm726, %v2196, 0.0
        %v2359 = vadd.f32 %v2357, %v2358
        %v2360 = vsel %vm726, %v2201, 0.0
        %v2361 = vadd.f32 %v2359, %v2360
        %v2362 = vsel %vm726, %v2206, 0.0
        %v2363 = vadd.f32 %v2361, %v2362
        %v2364 = vsel %vm726, %v2211, 0.0
        %v2365 = vadd.f32 %v2363, %v2364
        %v2366 = vsel %vm726, %v2216, 0.0
        %v2367 = vadd.f32 %v2365, %v2366
        %v2368 = vsel %vm726, %v2221, 0.0
        %v2369 = vadd.f32 %v2367, %v2368
        %v2370 = vsel %vm726, %v2226, 0.0
        %v2371 = vadd.f32 %v2369, %v2370
        %v2372 = vsel %vm726, %v2231, 0.0
        %v2373 = vadd.f32 %v2371, %v2372
        %v2374 = vsel %vm726, %v2236, 0.0
        %v2375 = vadd.f32 %v2373, %v2374
        %v2376 = vsel %vm726, %v2241, 0.0
        %v2377 = vadd.f32 %v2375, %v2376
        %v2378 = vsel %vm726, %v2246, 0.0
        %v2379 = vadd.f32 %v2377, %v2378
        %v2380 = vsel %vm726, %v2251, 0.0
        %v2381 = vadd.f32 %v2379, %v2380
        %v2382 = vsel %vm726, %v2256, 0.0
        %v2383 = vadd.f32 %v2381, %v2382
        %v2384 = vsel %vm726, %v2261, 0.0
        %v2385 = vadd.f32 %v2383, %v2384
        %v2386 = vsel %vm726, %v2266, 0.0
        %v2387 = vadd.f32 %v2385, %v2386
        %v2388 = vsel %vm726, %v2271, 0.0
        %v2389 = vadd.f32 %v2387, %v2388
        %v2390 = vsel %vm726, %v2276, 0.0
        %v2391 = vadd.f32 %v2389, %v2390
        %v2392 = vsel %vm726, %v2281, 0.0
        %v2393 = vadd.f32 %v2391, %v2392
        %v2394 = vsel %vm726, %v2286, 0.0
        %v2395 = vadd.f32 %v2393, %v2394
        %v2396 = vsel %vm726, %v2291, 0.0
        %v2397 = vadd.f32 %v2395, %v2396
        %v2398 = vsel %vm726, %v2296, 0.0
        %v2399 = vadd.f32 %v2397, %v2398
        %v2400 = vsel %vm726, %v2301, 0.0
        %v2401 = vadd.f32 %v2399, %v2400
        %v2402 = vsel %vm726, %v2306, 0.0
        %v2403 = vadd.f32 %v2401, %v2402
        %v2404 = vrot.slane %v2403, 4
        %v2405 = vadd.f32 %v2403, %v2404
        %v2406 = vrot.slane %v2405, 2
        %v2407 = vadd.f32 %v2405, %v2406
        %v2408 = vrot.slane %v2407, 1
        %v2409 = vadd.f32 %v2407, %v2408
        %v2410 = vmul.f32 %v2409, 0.00390625
        %v2411 = vsub.f32 %v2151, %v2410
        %v2412 = vsub.f32 %v2156, %v2410
        %v2413 = vsub.f32 %v2161, %v2410
        %v2414 = vsub.f32 %v2166, %v2410
        %v2415 = vsub.f32 %v2171, %v2410
        %v2416 = vsub.f32 %v2176, %v2410
        %v2417 = vsub.f32 %v2181, %v2410
        %v2418 = vsub.f32 %v2186, %v2410
        %v2419 = vsub.f32 %v2191, %v2410
        %v2420 = vsub.f32 %v2196, %v2410
        %v2421 = vsub.f32 %v2201, %v2410
        %v2422 = vsub.f32 %v2206, %v2410
        %v2423 = vsub.f32 %v2211, %v2410
        %v2424 = vsub.f32 %v2216, %v2410
        %v2425 = vsub.f32 %v2221, %v2410
        %v2426 = vsub.f32 %v2226, %v2410
        %v2427 = vsub.f32 %v2231, %v2410
        %v2428 = vsub.f32 %v2236, %v2410
        %v2429 = vsub.f32 %v2241, %v2410
        %v2430 = vsub.f32 %v2246, %v2410
        %v2431 = vsub.f32 %v2251, %v2410
        %v2432 = vsub.f32 %v2256, %v2410
        %v2433 = vsub.f32 %v2261, %v2410
        %v2434 = vsub.f32 %v2266, %v2410
        %v2435 = vsub.f32 %v2271, %v2410
        %v2436 = vsub.f32 %v2276, %v2410
        %v2437 = vsub.f32 %v2281, %v2410
        %v2438 = vsub.f32 %v2286, %v2410
        %v2439 = vsub.f32 %v2291, %v2410
        %v2440 = vsub.f32 %v2296, %v2410
        %v2441 = vsub.f32 %v2301, %v2410
        %v2442 = vsub.f32 %v2306, %v2410
        %v2443 = vmul.f32 %v2411, %v2411
        %v2444 = vmul.f32 %v2412, %v2412
        %v2445 = vmul.f32 %v2413, %v2413
        %v2446 = vmul.f32 %v2414, %v2414
        %v2447 = vmul.f32 %v2415, %v2415
        %v2448 = vmul.f32 %v2416, %v2416
        %v2449 = vmul.f32 %v2417, %v2417
        %v2450 = vmul.f32 %v2418, %v2418
        %v2451 = vmul.f32 %v2419, %v2419
        %v2452 = vmul.f32 %v2420, %v2420
        %v2453 = vmul.f32 %v2421, %v2421
        %v2454 = vmul.f32 %v2422, %v2422
        %v2455 = vmul.f32 %v2423, %v2423
        %v2456 = vmul.f32 %v2424, %v2424
        %v2457 = vmul.f32 %v2425, %v2425
        %v2458 = vmul.f32 %v2426, %v2426
        %v2459 = vmul.f32 %v2427, %v2427
        %v2460 = vmul.f32 %v2428, %v2428
        %v2461 = vmul.f32 %v2429, %v2429
        %v2462 = vmul.f32 %v2430, %v2430
        %v2463 = vmul.f32 %v2431, %v2431
        %v2464 = vmul.f32 %v2432, %v2432
        %v2465 = vmul.f32 %v2433, %v2433
        %v2466 = vmul.f32 %v2434, %v2434
        %v2467 = vmul.f32 %v2435, %v2435
        %v2468 = vmul.f32 %v2436, %v2436
        %v2469 = vmul.f32 %v2437, %v2437
        %v2470 = vmul.f32 %v2438, %v2438
        %v2471 = vmul.f32 %v2439, %v2439
        %v2472 = vmul.f32 %v2440, %v2440
        %v2473 = vmul.f32 %v2441, %v2441
        %v2474 = vmul.f32 %v2442, %v2442
        %v2475 = vsel %vm726, %v2443, 0.0
        %v2476 = vsel %vm726, %v2444, 0.0
        %v2477 = vadd.f32 %v2475, %v2476
        %v2478 = vsel %vm726, %v2445, 0.0
        %v2479 = vadd.f32 %v2477, %v2478
        %v2480 = vsel %vm726, %v2446, 0.0
        %v2481 = vadd.f32 %v2479, %v2480
        %v2482 = vsel %vm726, %v2447, 0.0
        %v2483 = vadd.f32 %v2481, %v2482
        %v2484 = vsel %vm726, %v2448, 0.0
        %v2485 = vadd.f32 %v2483, %v2484
        %v2486 = vsel %vm726, %v2449, 0.0
        %v2487 = vadd.f32 %v2485, %v2486
        %v2488 = vsel %vm726, %v2450, 0.0
        %v2489 = vadd.f32 %v2487, %v2488
        %v2490 = vsel %vm726, %v2451, 0.0
        %v2491 = vadd.f32 %v2489, %v2490
        %v2492 = vsel %vm726, %v2452, 0.0
        %v2493 = vadd.f32 %v2491, %v2492
        %v2494 = vsel %vm726, %v2453, 0.0
        %v2495 = vadd.f32 %v2493, %v2494
        %v2496 = vsel %vm726, %v2454, 0.0
        %v2497 = vadd.f32 %v2495, %v2496
        %v2498 = vsel %vm726, %v2455, 0.0
        %v2499 = vadd.f32 %v2497, %v2498
        %v2500 = vsel %vm726, %v2456, 0.0
        %v2501 = vadd.f32 %v2499, %v2500
        %v2502 = vsel %vm726, %v2457, 0.0
        %v2503 = vadd.f32 %v2501, %v2502
        %v2504 = vsel %vm726, %v2458, 0.0
        %v2505 = vadd.f32 %v2503, %v2504
        %v2506 = vsel %vm726, %v2459, 0.0
        %v2507 = vadd.f32 %v2505, %v2506
        %v2508 = vsel %vm726, %v2460, 0.0
        %v2509 = vadd.f32 %v2507, %v2508
        %v2510 = vsel %vm726, %v2461, 0.0
        %v2511 = vadd.f32 %v2509, %v2510
        %v2512 = vsel %vm726, %v2462, 0.0
        %v2513 = vadd.f32 %v2511, %v2512
        %v2514 = vsel %vm726, %v2463, 0.0
        %v2515 = vadd.f32 %v2513, %v2514
        %v2516 = vsel %vm726, %v2464, 0.0
        %v2517 = vadd.f32 %v2515, %v2516
        %v2518 = vsel %vm726, %v2465, 0.0
        %v2519 = vadd.f32 %v2517, %v2518
        %v2520 = vsel %vm726, %v2466, 0.0
        %v2521 = vadd.f32 %v2519, %v2520
        %v2522 = vsel %vm726, %v2467, 0.0
        %v2523 = vadd.f32 %v2521, %v2522
        %v2524 = vsel %vm726, %v2468, 0.0
        %v2525 = vadd.f32 %v2523, %v2524
        %v2526 = vsel %vm726, %v2469, 0.0
        %v2527 = vadd.f32 %v2525, %v2526
        %v2528 = vsel %vm726, %v2470, 0.0
        %v2529 = vadd.f32 %v2527, %v2528
        %v2530 = vsel %vm726, %v2471, 0.0
        %v2531 = vadd.f32 %v2529, %v2530
        %v2532 = vsel %vm726, %v2472, 0.0
        %v2533 = vadd.f32 %v2531, %v2532
        %v2534 = vsel %vm726, %v2473, 0.0
        %v2535 = vadd.f32 %v2533, %v2534
        %v2536 = vsel %vm726, %v2474, 0.0
        %v2537 = vadd.f32 %v2535, %v2536
        %v2538 = vrot.slane %v2537, 4
        %v2539 = vadd.f32 %v2537, %v2538
        %v2540 = vrot.slane %v2539, 2
        %v2541 = vadd.f32 %v2539, %v2540
        %v2542 = vrot.slane %v2541, 1
        %v2543 = vadd.f32 %v2541, %v2542
        %vm2544 = vcmask 1040384
        %v2545 = vsel %vm2544, %v2409, %v2543
        %vm2546 = vcmask 58368
        %2547 = vst.msk [vmem:[%s364] sm:$0x3] %vm2546, %v2545
        %s2548 = smul.u32 32, %s29
        %p2549 = scmp.lt.s32.totalorder %s28, 1
        %s2550 = scalar_select %p2549, %s28, 1
        %p2551 = scmp.lt.s32.totalorder %s2548, 31
        %s2552 = scalar_select %p2551, %s2548, 31
        %s2553 = smul.addr %s2550, 32
        %s2554 = sadd.s32 %s2552, %s2553
        %s2555 = smul.addr %s2554, 8
        %s2556 = scalar_lea.vmem %s8, %s2555
        %s2557 = sand.u32 %s249, 1
        %s2558 = scalar_lea.sflag [#allocation3], %s2557
        %s2559 = sand.u32 %s249, 1
        %s2560 = smul.addr %s2559, 2
        %s2561 = scalar_lea.vmem [#allocation2], %s2560
        // Predicated region
        $region53: #{tpu_custom_call.1} parent=51 // pred_check
          %p2562 = pneg %p231
        $region54: #{tpu_custom_call.1} parent=51 // pred_check_branch
          %2564 = sbr.rel (%p2562) target = $region56
        $region55: #{tpu_custom_call.1} parent=51 // pred_region
          %s2565 = smul.u32 32, %s29
        $region56: #{tpu_custom_call.1} parent=51 // pred_fallthru
          _
        // Predicated region
        $region57: #{tpu_custom_call.1} parent=51 // pred_check
          %p2566 = pneg %p259
        $region58: #{tpu_custom_call.1} parent=51 // pred_check_branch
          %2568 = sbr.rel (%p2566) target = $region60
        $region59: #{tpu_custom_call.1} parent=51 // pred_region
          %s2570 = ssub.s32 32, 32
          %2571 = vsyncadd %s2558, %s2570
          %s2572 = sadd.s32 %s29, %s28
          %s2573 = smul.addr %s2572, 32
          %s2574 = scalar_lea.hbm %s9, %s2573
          %s2576 = sshll.u32 %s2561, 4
          %s2577 = int_to_ptr.vmem [resolvable:$true] %s2576
          %2579 = dma.vmem_to_hbm [thread:$0]  %s2577, 32, %s2574, %s2558
        $region60: #{tpu_custom_call.1} parent=51 // pred_fallthru
          _
      $region52: #{tpu_custom_call.1} parent=5 // pred_fallthru
        _
      %p2580 = scmp.le.s32.totalorder 2, %s19
      // Predicated region
      $region61: #{tpu_custom_call.1} parent=5 // pred_check
        %p2581 = pneg %p2580
      $region62: #{tpu_custom_call.1} parent=5 // pred_check_branch
        %2583 = sbr.rel (%p2581) target = $region64
      $region63: #{tpu_custom_call.1} parent=5 // pred_region
        %s2584 = ssub.s32 %s19, 2
        // Predicated region
        $region65: #{tpu_custom_call.1} parent=63 // pred_check
          %p2585 = pneg %p237
        $region66: #{tpu_custom_call.1} parent=63 // pred_check_branch
          %2587 = sbr.rel (%p2585) target = $region68
        $region67: #{tpu_custom_call.1} parent=63 // pred_region
          %s2588 = smul.u32 32, %s31
          %p2589 = scmp.lt.s32.totalorder %s30, 1
          %s2590 = scalar_select %p2589, %s30, 1
          %p2591 = scmp.lt.s32.totalorder %s2588, 31
          %s2592 = scalar_select %p2591, %s2588, 31
          %s2593 = smul.addr %s2590, 32
          %s2594 = sadd.s32 %s2592, %s2593
          %s2595 = smul.addr %s2594, 8
          %s2596 = scalar_lea.vmem %s8, %s2595
        $region68: #{tpu_custom_call.1} parent=63 // pred_fallthru
          _
        // Predicated region
        $region69: #{tpu_custom_call.1} parent=63 // pred_check
          %p2597 = pneg %p265
        $region70: #{tpu_custom_call.1} parent=63 // pred_check_branch
          %2599 = sbr.rel (%p2597) target = $region72
        $region71: #{tpu_custom_call.1} parent=63 // pred_region
          %s2600 = sand.u32 %s250, 1
          %s2601 = scalar_lea.sflag [#allocation3], %s2600
          %s2602 = sand.u32 %s250, 1
          %s2603 = smul.addr %s2602, 2
          %s2604 = scalar_lea.vmem [#allocation2], %s2603
          %2605 = dma.done %s2601, 32
        $region72: #{tpu_custom_call.1} parent=63 // pred_fallthru
          _
      $region64: #{tpu_custom_call.1} parent=5 // pred_fallthru
        _
    $region6: #{tpu_custom_call.1} parent=1 // loop_footer
      %s23 = sadd.s32 1, %s19
    $region7: #{tpu_custom_call.1} parent=1 // loop_footer_branch
      %18 = sbr.rel target = $region3
    $region8: #{tpu_custom_call.1} parent=1 // loop_exit
      _
    %2606 = vsyncpa [#allocation3], 1
    %s2607 = scalar_lea.sflag [#allocation3], 1
    %2608 = vsyncpa %s2607, 1

</llo_original>
